<compile_context>
chip_gen: v7x
topology: tpu7x:2x2x1
jax: 0.10.0
libtpu: 0.0.40
codegen_flags: <defaults>
</compile_context>

<pallas_src>
import functools

import jax
import jax.numpy as jnp
import numpy as np
from jax.experimental import pallas as pl
from jax.experimental.pallas import tpu as pltpu


def _embeddings_kernel(ids_ref, table_ref, pos_ref, gamma_ref, beta_ref,
                       out_ref, y_scratch,
                       *, eps, batch_block, seq_len, vocab, vocab_pad, dim):
    # ids_ref:   VMEM (batch_block*S, 1) int32  token ids for this block
    # table_ref: VMEM (V_pad, D) f32            zero-padded letter table (resident)
    # pos_ref:   VMEM (S, D) f32                positional rows 0..S-1 (resident)
    # gamma_ref: VMEM (1, D) f32                LayerNorm scale (resident)
    # beta_ref:  VMEM (1, D) f32                LayerNorm shift (resident)
    # out_ref:   VMEM (batch_block, S*D) f32    lane-dense output block
    # y_scratch: VMEM (batch_block, S, D) f32   staging for the lane-dense stores
    n = batch_block * seq_len

    # --- 1. Vectorized embedding gather: one-hot (N, V_pad) @ (V_pad, D) on MXU.
    #        (JAX-gather semantics: out-of-range ids are clamped; PyTorch's
    #         nn.Embedding would raise instead.)
    ids = jnp.clip(ids_ref[...], 0, vocab - 1)                        # (N, 1)
    iota = jax.lax.broadcasted_iota(jnp.int32, (n, vocab_pad), 1)     # (N, Vp)
    onehot = (iota == ids).astype(jnp.float32)                        # (N, Vp)
    emb = jnp.dot(onehot, table_ref[...],
                  preferred_element_type=jnp.float32,
                  precision=jax.lax.Precision.HIGHEST)                # (N, D)

    # --- 2. Positional add: resident (S, D) slab broadcast over the batch block.
    e = emb.reshape(batch_block, seq_len, dim) + pos_ref[...][None, :, :]

    # --- 3. TF-style LayerNorm, two-pass statistics (matches reference numerics).
    u = jnp.mean(e, axis=-1, keepdims=True)
    d = e - u
    s = jnp.mean(d * d, axis=-1, keepdims=True)
    y = gamma_ref[...] * (d * jax.lax.rsqrt(s + eps)) + beta_ref[...]

    # --- 4. Dropout: inference-mode identity.
    # TODO(synk): training-mode dropout (pltpu.prng_seed / prng_random_bits mask).

    # --- 5. Single pass of lane-dense writeback: the output block's last dim is
    #        S*D (multiple of 128), so the VMEM buffer and writeback DMA are dense.
    y_scratch[...] = y
    for si in range(seq_len):                 # static, small
        out_ref[:, si * dim:(si + 1) * dim] = y_scratch[:, si, :]


def make_position_encoding(maxlen, dim):
    """Replicates the PyTorch position_enc construction exactly."""
    pos = np.arange(maxlen, dtype=np.float32)[:, None]            # (maxlen, 1)
    i = np.arange(dim, dtype=np.float32)[None, :]                 # (1, dim)
    angle = pos / np.power(10000.0, (i - (i % 2)) / float(dim))   # (maxlen, dim)
    enc = np.array(angle, dtype=np.float32)
    enc[:, 0::2] = np.sin(enc[:, 0::2])
    enc[:, 1::2] = np.cos(enc[:, 1::2])
    return jnp.asarray(enc, dtype=jnp.float32)


def _pick_batch_block(B, S, D, target_bytes=2 << 20):
    """Single grid step for small problems; otherwise the largest
    multiple-of-8 divisor of B whose output block stays under ~target_bytes."""
    if B * S * D * 4 <= target_bytes:
        return B
    best = B
    bt = 8
    while bt < B:
        if B % bt == 0 and bt * S * D * 4 <= target_bytes:
            best = bt
        bt += 8
    return best


def embeddings_forward(x, letter_table, pos_table, gamma, beta, eps=1e-12,
                       batch_block=None):
    """x: int32 [B, S] token ids.  Returns float32 [B, S, D]."""
    B, S = x.shape
    V, D = letter_table.shape
    if S > pos_table.shape[0]:
        raise ValueError(f"seq_len {S} exceeds positional table rows "
                         f"{pos_table.shape[0]}")
    if batch_block is None:
        batch_block = _pick_batch_block(B, S, D)
    if B % batch_block != 0:
        raise ValueError(f"batch_block {batch_block} must divide batch {B}")
    if batch_block != B and batch_block % 8 != 0:
        raise ValueError("batch_block must be B or a multiple of 8")
    num_blocks = B // batch_block

    # MXU-aligned contraction dim for the one-hot gather (v5e's 128x128 MXU);
    # padding rows are zero and never selected because ids are clipped to [0, V).
    V_pad = max(128, ((V + 127) // 128) * 128)
    table_pad = jnp.zeros((V_pad, D), jnp.float32).at[:V, :].set(
        letter_table.astype(jnp.float32))

    ids2 = x.reshape(B * S, 1).astype(jnp.int32)            # per-block VMEM input
    pos_s = pos_table[:S].astype(jnp.float32)               # (S, D), no tiling
    gamma2 = gamma.reshape(1, D).astype(jnp.float32)
    beta2 = beta.reshape(1, D).astype(jnp.float32)

    kernel = functools.partial(
        _embeddings_kernel, eps=eps, batch_block=batch_block, seq_len=S,
        vocab=V, vocab_pad=V_pad, dim=D)

    # VMEM budget (lane-padded, conservative): double-buffered blocks + residents
    # + scratch, capped below v7x's 64 MiB physical VMEM.
    out_block = batch_block * S * D * 4
    ids_block = batch_block * S * 128 * 4
    scratch = batch_block * S * 128 * 4
    resident = (V_pad * 128 + S * 128 + 2 * 128) * 4
    vmem_limit = int(min(max(4 * (out_block + ids_block) + scratch
                             + 2 * resident, 4 << 20), 48 << 20))

    out_flat = pl.pallas_call(
        kernel,
        out_shape=jax.ShapeDtypeStruct((B, S * D), jnp.float32),
        grid_spec=pltpu.PrefetchScalarGridSpec(
            num_scalar_prefetch=0,
            grid=(num_blocks,),
            in_specs=[
                pl.BlockSpec((batch_block * S, 1), lambda i: (i, 0)),  # ids
                pl.BlockSpec((V_pad, D), lambda i: (0, 0)),            # table
                pl.BlockSpec((S, D), lambda i: (0, 0)),                # pos
                pl.BlockSpec((1, D), lambda i: (0, 0)),                # gamma
                pl.BlockSpec((1, D), lambda i: (0, 0)),                # beta
            ],
            out_specs=pl.BlockSpec((batch_block, S * D), lambda i: (i, 0)),
            scratch_shapes=[pltpu.VMEM((batch_block, S, D), jnp.float32)],
        ),
        compiler_params=pltpu.CompilerParams(
            dimension_semantics=("parallel",),
            vmem_limit_bytes=vmem_limit,
        ),
    )(ids2, table_pad, pos_s, gamma2, beta2)

    return out_flat.reshape(B, S, D)


def embeddings_reference(x, letter_table, pos_table, gamma, beta, eps=1e-12):
    """Pure-JAX reference of the PyTorch forward (eval mode)."""
    B, S = x.shape
    e = letter_table[x] + pos_table[:S][None, :, :]
    u = jnp.mean(e, axis=-1, keepdims=True)
    s = jnp.mean((e - u) ** 2, axis=-1, keepdims=True)
    xn = (e - u) / jnp.sqrt(s + eps)
    return gamma * xn + beta


if __name__ == "__main__":
    # Small config consistent with the module (letter vocab 40, dim 32, maxlen 25).
    cfg = dict(voc_len=40, dim=32, drop_rate=0.1)
    B, S = 8, 8
    V, D = cfg["voc_len"], cfg["dim"]
    MAXLEN = 25

    key = jax.random.PRNGKey(0)
    k_ids, k_emb = jax.random.split(key)

    # Deterministic "parameters" (nn.Embedding default init ~ N(0,1)).
    letter_table = jax.random.normal(k_emb, (V, D), dtype=jnp.float32)
    gamma = jnp.ones((D,), dtype=jnp.float32)
    beta = jnp.zeros((D,), dtype=jnp.float32)
    pos_table = make_position_encoding(MAXLEN, D)

    # Example input token ids.
    x = jax.random.randint(k_ids, (B, S), 0, V, dtype=jnp.int32)

    # Small problem -> batch_block = B, grid=(1,): no per-step pipeline overhead.
    out = embeddings_forward(x, letter_table, pos_table, gamma, beta)
    out = jax.block_until_ready(out)

    ref = embeddings_reference(x, letter_table, pos_table, gamma, beta)
    assert out.shape == (B, S, D)
    np_out = np.asarray(out)
    np_ref = np.asarray(ref)
    assert np.allclose(np_out, np_ref, atol=1e-5, rtol=1e-5), (
        np.abs(np_out - np_ref).max())

    print("KERNEL_OK")
</pallas_src>

<mosaic_0001>
module attributes {stable_mosaic.version = 11 : i64} {
  func.func @_embeddings_kernel(%arg0: i32, %arg1: memref<64x1xi32, #tpu.memory_space<vmem>>, %arg2: memref<128x32xf32, #tpu.memory_space<vmem>>, %arg3: memref<8x32xf32, #tpu.memory_space<vmem>>, %arg4: memref<1x32xf32, #tpu.memory_space<vmem>>, %arg5: memref<1x32xf32, #tpu.memory_space<vmem>>, %arg6: memref<8x256xf32, #tpu.memory_space<vmem>>, %arg7: memref<8x8x32xf32, #tpu.memory_space<vmem>>) attributes {dimension_semantics = [#tpu.dimension_semantics<parallel>], iteration_bounds = array<i64: 1>, scalar_prefetch = 0 : i64, scratch_operands = 1 : i64, tpu.core_type = #tpu.core_type<tc>, window_params = [{transform_indices = @transform_0, window_bounds = array<i64: 64, 1>}, {pipeline_mode = #tpu.pipeline_mode<synchronous>, transform_indices = @transform_1, window_bounds = array<i64: 128, 32>}, {pipeline_mode = #tpu.pipeline_mode<synchronous>, transform_indices = @transform_2, window_bounds = array<i64: 8, 32>}, {pipeline_mode = #tpu.pipeline_mode<synchronous>, transform_indices = @transform_3, window_bounds = array<i64: 1, 32>}, {pipeline_mode = #tpu.pipeline_mode<synchronous>, transform_indices = @transform_4, window_bounds = array<i64: 1, 32>}, {transform_indices = @transform_5, window_bounds = array<i64: 8, 256>}]} {
    %c0 = arith.constant 0 : index
    %c0_0 = arith.constant 0 : index
    %0 = vector.load %arg1[%c0, %c0_0] : memref<64x1xi32, #tpu.memory_space<vmem>>, vector<64x1xi32>
    %c0_i32 = arith.constant 0 : i32
    %c39_i32 = arith.constant 39 : i32
    %1 = vector.broadcast %c0_i32 : i32 to vector<64x1xi32>
    %2 = arith.maxsi %1, %0 : vector<64x1xi32>
    %3 = vector.broadcast %c39_i32 : i32 to vector<64x1xi32>
    %4 = arith.minsi %3, %2 : vector<64x1xi32>
    %5 = tpu.iota {dimensions = array<i32: 1>} : vector<64x128xi32>
    %6 = vector.broadcast %4 : vector<64x1xi32> to vector<64x128xi32>
    %7 = arith.cmpi eq, %5, %6 : vector<64x128xi32>
    %8 = arith.extui %7 : vector<64x128xi1> to vector<64x128xi32>
    %9 = arith.sitofp %8 : vector<64x128xi32> to vector<64x128xf32>
    %c0_1 = arith.constant 0 : index
    %c0_2 = arith.constant 0 : index
    %10 = vector.load %arg2[%c0_1, %c0_2] : memref<128x32xf32, #tpu.memory_space<vmem>>, vector<128x32xf32>
    %cst = arith.constant dense<0.000000e+00> : vector<64x32xf32>
    %11 = tpu.matmul %9, %10, %cst {dimension_numbers = #tpu.dot_dimension_numbers<[1], [0], [0], [1], [0, 0, 1, 1], [], []>, precision = #tpu.contract_precision<fp32>} : vector<64x128xf32>, vector<128x32xf32>, vector<64x32xf32> -> vector<64x32xf32>
    %12 = vector.shape_cast %11 : vector<64x32xf32> to vector<8x8x32xf32>
    %c0_3 = arith.constant 0 : index
    %c0_4 = arith.constant 0 : index
    %13 = vector.load %arg3[%c0_3, %c0_4] : memref<8x32xf32, #tpu.memory_space<vmem>>, vector<8x32xf32>
    %14 = vector.shape_cast %13 : vector<8x32xf32> to vector<1x8x32xf32>
    %15 = vector.broadcast %14 : vector<1x8x32xf32> to vector<8x8x32xf32>
    %16 = arith.addf %12, %15 : vector<8x8x32xf32>
    %cst_5 = arith.constant dense<0.000000e+00> : vector<8x8xf32>
    %17 = vector.multi_reduction <add>, %16, %cst_5 [2] : vector<8x8x32xf32> to vector<8x8xf32>
    %18 = vector.shape_cast %17 : vector<8x8xf32> to vector<8x8x1xf32>
    %cst_6 = arith.constant 3.200000e+01 : f32
    %19 = vector.broadcast %cst_6 : f32 to vector<8x8x1xf32>
    %20 = arith.divf %18, %19 : vector<8x8x1xf32>
    %21 = vector.broadcast %20 : vector<8x8x1xf32> to vector<8x8x32xf32>
    %22 = arith.subf %16, %21 : vector<8x8x32xf32>
    %23 = arith.mulf %22, %22 : vector<8x8x32xf32>
    %cst_7 = arith.constant dense<0.000000e+00> : vector<8x8xf32>
    %24 = vector.multi_reduction <add>, %23, %cst_7 [2] : vector<8x8x32xf32> to vector<8x8xf32>
    %25 = vector.shape_cast %24 : vector<8x8xf32> to vector<8x8x1xf32>
    %cst_8 = arith.constant 3.200000e+01 : f32
    %26 = vector.broadcast %cst_8 : f32 to vector<8x8x1xf32>
    %27 = arith.divf %25, %26 : vector<8x8x1xf32>
    %c0_9 = arith.constant 0 : index
    %c0_10 = arith.constant 0 : index
    %28 = vector.load %arg4[%c0_9, %c0_10] : memref<1x32xf32, #tpu.memory_space<vmem>>, vector<1x32xf32>
    %cst_11 = arith.constant 9.99999996E-13 : f32
    %29 = vector.broadcast %cst_11 : f32 to vector<8x8x1xf32>
    %30 = arith.addf %27, %29 : vector<8x8x1xf32>
    %31 = math.rsqrt %30 : vector<8x8x1xf32>
    %32 = vector.broadcast %31 : vector<8x8x1xf32> to vector<8x8x32xf32>
    %33 = arith.mulf %22, %32 : vector<8x8x32xf32>
    %34 = vector.shape_cast %28 : vector<1x32xf32> to vector<1x1x32xf32>
    %35 = vector.broadcast %34 : vector<1x1x32xf32> to vector<8x8x32xf32>
    %36 = arith.mulf %35, %33 : vector<8x8x32xf32>
    %c0_12 = arith.constant 0 : index
    %c0_13 = arith.constant 0 : index
    %37 = vector.load %arg5[%c0_12, %c0_13] : memref<1x32xf32, #tpu.memory_space<vmem>>, vector<1x32xf32>
    %38 = vector.shape_cast %37 : vector<1x32xf32> to vector<1x1x32xf32>
    %39 = vector.broadcast %38 : vector<1x1x32xf32> to vector<8x8x32xf32>
    %40 = arith.addf %36, %39 : vector<8x8x32xf32>
    %c0_14 = arith.constant 0 : index
    %c0_15 = arith.constant 0 : index
    %c0_16 = arith.constant 0 : index
    %41 = vector.load %arg7[%c0_14, %c0_15, %c0_16] : memref<8x8x32xf32, #tpu.memory_space<vmem>>, vector<8x8x32xf32>
    tpu.vector_store %arg7[%c0_14, %c0_15, %c0_16], %40 {strides = array<i32>} : memref<8x8x32xf32, #tpu.memory_space<vmem>>, vector<8x8x32xf32>,
    %c0_17 = arith.constant 0 : index
    %c0_18 = arith.constant 0 : index
    %c0_19 = arith.constant 0 : index
    %42 = vector.load %arg7[%c0_17, %c0_18, %c0_19] : memref<8x8x32xf32, #tpu.memory_space<vmem>>, vector<8x1x32xf32>
    %43 = vector.shape_cast %42 : vector<8x1x32xf32> to vector<8x32xf32>
    %c0_20 = arith.constant 0 : index
    %c0_21 = arith.constant 0 : index
    %44 = vector.load %arg6[%c0_20, %c0_21] : memref<8x256xf32, #tpu.memory_space<vmem>>, vector<8x32xf32>
    tpu.vector_store %arg6[%c0_20, %c0_21], %43 {strides = array<i32>} : memref<8x256xf32, #tpu.memory_space<vmem>>, vector<8x32xf32>,
    %c0_22 = arith.constant 0 : index
    %c1 = arith.constant 1 : index
    %c0_23 = arith.constant 0 : index
    %45 = vector.load %arg7[%c0_22, %c1, %c0_23] : memref<8x8x32xf32, #tpu.memory_space<vmem>>, vector<8x1x32xf32>
    %46 = vector.shape_cast %45 : vector<8x1x32xf32> to vector<8x32xf32>
    %c0_24 = arith.constant 0 : index
    %c32 = arith.constant 32 : index
    %47 = vector.load %arg6[%c0_24, %c32] : memref<8x256xf32, #tpu.memory_space<vmem>>, vector<8x32xf32>
    tpu.vector_store %arg6[%c0_24, %c32], %46 {strides = array<i32>} : memref<8x256xf32, #tpu.memory_space<vmem>>, vector<8x32xf32>,
    %c0_25 = arith.constant 0 : index
    %c2 = arith.constant 2 : index
    %c0_26 = arith.constant 0 : index
    %48 = vector.load %arg7[%c0_25, %c2, %c0_26] : memref<8x8x32xf32, #tpu.memory_space<vmem>>, vector<8x1x32xf32>
    %49 = vector.shape_cast %48 : vector<8x1x32xf32> to vector<8x32xf32>
    %c0_27 = arith.constant 0 : index
    %c64 = arith.constant 64 : index
    %50 = vector.load %arg6[%c0_27, %c64] : memref<8x256xf32, #tpu.memory_space<vmem>>, vector<8x32xf32>
    tpu.vector_store %arg6[%c0_27, %c64], %49 {strides = array<i32>} : memref<8x256xf32, #tpu.memory_space<vmem>>, vector<8x32xf32>,
    %c0_28 = arith.constant 0 : index
    %c3 = arith.constant 3 : index
    %c0_29 = arith.constant 0 : index
    %51 = vector.load %arg7[%c0_28, %c3, %c0_29] : memref<8x8x32xf32, #tpu.memory_space<vmem>>, vector<8x1x32xf32>
    %52 = vector.shape_cast %51 : vector<8x1x32xf32> to vector<8x32xf32>
    %c0_30 = arith.constant 0 : index
    %c96 = arith.constant 96 : index
    %53 = vector.load %arg6[%c0_30, %c96] : memref<8x256xf32, #tpu.memory_space<vmem>>, vector<8x32xf32>
    tpu.vector_store %arg6[%c0_30, %c96], %52 {strides = array<i32>} : memref<8x256xf32, #tpu.memory_space<vmem>>, vector<8x32xf32>,
    %c0_31 = arith.constant 0 : index
    %c4 = arith.constant 4 : index
    %c0_32 = arith.constant 0 : index
    %54 = vector.load %arg7[%c0_31, %c4, %c0_32] : memref<8x8x32xf32, #tpu.memory_space<vmem>>, vector<8x1x32xf32>
    %55 = vector.shape_cast %54 : vector<8x1x32xf32> to vector<8x32xf32>
    %c0_33 = arith.constant 0 : index
    %c128 = arith.constant 128 : index
    %56 = vector.load %arg6[%c0_33, %c128] : memref<8x256xf32, #tpu.memory_space<vmem>>, vector<8x32xf32>
    tpu.vector_store %arg6[%c0_33, %c128], %55 {strides = array<i32>} : memref<8x256xf32, #tpu.memory_space<vmem>>, vector<8x32xf32>,
    %c0_34 = arith.constant 0 : index
    %c5 = arith.constant 5 : index
    %c0_35 = arith.constant 0 : index
    %57 = vector.load %arg7[%c0_34, %c5, %c0_35] : memref<8x8x32xf32, #tpu.memory_space<vmem>>, vector<8x1x32xf32>
    %58 = vector.shape_cast %57 : vector<8x1x32xf32> to vector<8x32xf32>
    %c0_36 = arith.constant 0 : index
    %c160 = arith.constant 160 : index
    %59 = vector.load %arg6[%c0_36, %c160] : memref<8x256xf32, #tpu.memory_space<vmem>>, vector<8x32xf32>
    tpu.vector_store %arg6[%c0_36, %c160], %58 {strides = array<i32>} : memref<8x256xf32, #tpu.memory_space<vmem>>, vector<8x32xf32>,
    %c0_37 = arith.constant 0 : index
    %c6 = arith.constant 6 : index
    %c0_38 = arith.constant 0 : index
    %60 = vector.load %arg7[%c0_37, %c6, %c0_38] : memref<8x8x32xf32, #tpu.memory_space<vmem>>, vector<8x1x32xf32>
    %61 = vector.shape_cast %60 : vector<8x1x32xf32> to vector<8x32xf32>
    %c0_39 = arith.constant 0 : index
    %c192 = arith.constant 192 : index
    %62 = vector.load %arg6[%c0_39, %c192] : memref<8x256xf32, #tpu.memory_space<vmem>>, vector<8x32xf32>
    tpu.vector_store %arg6[%c0_39, %c192], %61 {strides = array<i32>} : memref<8x256xf32, #tpu.memory_space<vmem>>, vector<8x32xf32>,
    %c0_40 = arith.constant 0 : index
    %c7 = arith.constant 7 : index
    %c0_41 = arith.constant 0 : index
    %63 = vector.load %arg7[%c0_40, %c7, %c0_41] : memref<8x8x32xf32, #tpu.memory_space<vmem>>, vector<8x1x32xf32>
    %64 = vector.shape_cast %63 : vector<8x1x32xf32> to vector<8x32xf32>
    %c0_42 = arith.constant 0 : index
    %c224 = arith.constant 224 : index
    %65 = vector.load %arg6[%c0_42, %c224] : memref<8x256xf32, #tpu.memory_space<vmem>>, vector<8x32xf32>
    tpu.vector_store %arg6[%c0_42, %c224], %64 {strides = array<i32>} : memref<8x256xf32, #tpu.memory_space<vmem>>, vector<8x32xf32>,
    return
  }
  func.func @transform_0(%arg0: i32) -> (i32, i32) {
    %c0_i32 = arith.constant 0 : i32
    %c0_i32_0 = arith.constant 0 : i32
    return %arg0, %c0_i32 : i32, i32
  }
  func.func @transform_1(%arg0: i32) -> (i32, i32) {
    %c0_i32 = arith.constant 0 : i32
    %c0_i32_0 = arith.constant 0 : i32
    %c0_i32_1 = arith.constant 0 : i32
    return %c0_i32, %c0_i32_0 : i32, i32
  }
  func.func @transform_2(%arg0: i32) -> (i32, i32) {
    %c0_i32 = arith.constant 0 : i32
    %c0_i32_0 = arith.constant 0 : i32
    %c0_i32_1 = arith.constant 0 : i32
    return %c0_i32, %c0_i32_0 : i32, i32
  }
  func.func @transform_3(%arg0: i32) -> (i32, i32) {
    %c0_i32 = arith.constant 0 : i32
    %c0_i32_0 = arith.constant 0 : i32
    %c0_i32_1 = arith.constant 0 : i32
    return %c0_i32, %c0_i32_0 : i32, i32
  }
  func.func @transform_4(%arg0: i32) -> (i32, i32) {
    %c0_i32 = arith.constant 0 : i32
    %c0_i32_0 = arith.constant 0 : i32
    %c0_i32_1 = arith.constant 0 : i32
    return %c0_i32, %c0_i32_0 : i32, i32
  }
  func.func @transform_5(%arg0: i32) -> (i32, i32) {
    %c0_i32 = arith.constant 0 : i32
    %c0_i32_0 = arith.constant 0 : i32
    return %arg0, %c0_i32 : i32, i32
  }
}

</mosaic_0001>

<llo_original>
// kernel: tpu_custom_call.1
$region0: #{tpu_custom_call.1}
  #allocation0 [shape = 'u32[]', space=smem, size = 0x4, offset = 0x4, fixed_abs, tag = 'smem constant byte address 0x4 - core index']
  #allocation1 [shape = 'u32[144,128]{1,0:T(1,128)}', space=vmem, size = 0x12000, scoped, tag = 'internal scratch']
  #allocation2 [shape = 'f32[8,8,32]{2,1,0:T(8,128)}', space=vmem, size = 0x8000, scoped, tag = 'scratch operand']
  %s0 = inlined_call_operand.vmem [shape: s32[64,1], index: 0, kind: input, shape index: {}]
  %s1 = inlined_call_operand.vmem [shape: f32[128,32], index: 1, kind: input, shape index: {}]
  %s2 = inlined_call_operand.vmem [shape: f32[8,32], index: 2, kind: input, shape index: {}]
  %s3 = inlined_call_operand.vmem [shape: f32[1,32], index: 3, kind: input, shape index: {}]
  %s4 = inlined_call_operand.vmem [shape: f32[1,32], index: 4, kind: input, shape index: {}]
  %s5 = inlined_call_operand.hbm [shape: f32[8,256], index: 5, kind: output, shape index: {}]
  %s6 = sld [smem:[#allocation0]]
  $region30: #{tpu_custom_call.1} parent=0
    _
  %s8 = ssub.s32 1, %s6
  %s9 = scalar_select 0, %s8, %s6
  $region1: #{tpu_custom_call.1} parent=0
    #allocation3 [shape = 'u8[8192]{0}', space=vmem, size = 0x2000, scoped, tag = 'output window, operand 0, single buffered']
    #allocation4 [shape = 's32[1]{0}', space=sflag, size = 0x4, scoped, tag = 'scoped memory for tpu_custom_call.1']
    %10 = vsyncpa [#allocation4], 0
    // Predicated region
    $region2: #{tpu_custom_call.1} parent=1 // pred_check
      _
    $region3: #{tpu_custom_call.1} parent=1 // pred_check_branch
      %12 = sbr.rel (0) target = $region5
    $region4: #{tpu_custom_call.1} parent=1 // pred_region
      _
    $region5: #{tpu_custom_call.1} parent=1 // pred_fallthru
      _
    // Predicated region
    $region6: #{tpu_custom_call.1} parent=1 // pred_check
      _
    $region7: #{tpu_custom_call.1} parent=1 // pred_check_branch
      %14 = sbr.rel (0) target = $region9
    $region8: #{tpu_custom_call.1} parent=1 // pred_region
      _
    $region9: #{tpu_custom_call.1} parent=1 // pred_fallthru
      _
    // Predicated region
    $region10: #{tpu_custom_call.1} parent=1 // pred_check
      _
    $region11: #{tpu_custom_call.1} parent=1 // pred_check_branch
      %16 = sbr.rel (0) target = $region13
    $region12: #{tpu_custom_call.1} parent=1 // pred_region
      _
    $region13: #{tpu_custom_call.1} parent=1 // pred_fallthru
      _
    // Predicated region
    $region14: #{tpu_custom_call.1} parent=1 // pred_check
      _
    $region15: #{tpu_custom_call.1} parent=1 // pred_check_branch
      %18 = sbr.rel (0) target = $region17
    $region16: #{tpu_custom_call.1} parent=1 // pred_region
      _
    $region17: #{tpu_custom_call.1} parent=1 // pred_fallthru
      _
    // Predicated region
    $region18: #{tpu_custom_call.1} parent=1 // pred_check
      _
    $region19: #{tpu_custom_call.1} parent=1 // pred_check_branch
      %20 = sbr.rel (0) target = $region21
    $region20: #{tpu_custom_call.1} parent=1 // pred_region
      _
    $region21: #{tpu_custom_call.1} parent=1 // pred_fallthru
      _
    %v21 = vld [vmem:[%s0] sm:$0xff]
    %v22 = vld [vmem:[%s0 + $0x8] sm:$0xff]
    %v23 = vld [vmem:[%s0 + $0x10] sm:$0xff]
    %v24 = vld [vmem:[%s0 + $0x18] sm:$0xff]
    %v25 = vld [vmem:[%s0 + $0x20] sm:$0xff]
    %v26 = vld [vmem:[%s0 + $0x28] sm:$0xff]
    %v27 = vld [vmem:[%s0 + $0x30] sm:$0xff]
    %v28 = vld [vmem:[%s0 + $0x38] sm:$0xff]
    %vm29 = vcmp.gt.s32.totalorder %v21, 0
    %v30 = vsel %vm29, %v21, 0
    %vm31 = vcmp.gt.s32.totalorder %v22, 0
    %v32 = vsel %vm31, %v22, 0
    %vm33 = vcmp.gt.s32.totalorder %v23, 0
    %v34 = vsel %vm33, %v23, 0
    %vm35 = vcmp.gt.s32.totalorder %v24, 0
    %v36 = vsel %vm35, %v24, 0
    %vm37 = vcmp.gt.s32.totalorder %v25, 0
    %v38 = vsel %vm37, %v25, 0
    %vm39 = vcmp.gt.s32.totalorder %v26, 0
    %v40 = vsel %vm39, %v26, 0
    %vm41 = vcmp.gt.s32.totalorder %v27, 0
    %v42 = vsel %vm41, %v27, 0
    %vm43 = vcmp.gt.s32.totalorder %v28, 0
    %v44 = vsel %vm43, %v28, 0
    %vm45 = vcmp.lt.s32.totalorder %v30, 39
    %v46 = vsel %vm45, %v30, 39
    %vm47 = vcmp.lt.s32.totalorder %v32, 39
    %v48 = vsel %vm47, %v32, 39
    %vm49 = vcmp.lt.s32.totalorder %v34, 39
    %v50 = vsel %vm49, %v34, 39
    %vm51 = vcmp.lt.s32.totalorder %v36, 39
    %v52 = vsel %vm51, %v36, 39
    %vm53 = vcmp.lt.s32.totalorder %v38, 39
    %v54 = vsel %vm53, %v38, 39
    %vm55 = vcmp.lt.s32.totalorder %v40, 39
    %v56 = vsel %vm55, %v40, 39
    %vm57 = vcmp.lt.s32.totalorder %v42, 39
    %v58 = vsel %vm57, %v42, 39
    %vm59 = vcmp.lt.s32.totalorder %v44, 39
    %v60 = vsel %vm59, %v44, 39
    %v61 = vlaneseq
    %v62 = vand.u32 %v61, 127
    %63 = vset.pattern.permute.xlu0 0
    %64 = vperm.xlu0 %63, %v46
    %v65 = vpop.permute.xlu0 %64
    %66 = vset.pattern.permute.xlu0 0
    %67 = vperm.xlu0 %66, %v48
    %v68 = vpop.permute.xlu0 %67
    %69 = vset.pattern.permute.xlu0 0
    %70 = vperm.xlu0 %69, %v50
    %v71 = vpop.permute.xlu0 %70
    %72 = vset.pattern.permute.xlu0 0
    %73 = vperm.xlu0 %72, %v52
    %v74 = vpop.permute.xlu0 %73
    %75 = vset.pattern.permute.xlu0 0
    %76 = vperm.xlu0 %75, %v54
    %v77 = vpop.permute.xlu0 %76
    %78 = vset.pattern.permute.xlu0 0
    %79 = vperm.xlu0 %78, %v56
    %v80 = vpop.permute.xlu0 %79
    %81 = vset.pattern.permute.xlu0 0
    %82 = vperm.xlu0 %81, %v58
    %v83 = vpop.permute.xlu0 %82
    %84 = vset.pattern.permute.xlu0 0
    %85 = vperm.xlu0 %84, %v60
    %v86 = vpop.permute.xlu0 %85
    %vm87 = vcmp.eq.s32.totalorder %v62, %v65
    %vm88 = vcmp.eq.s32.totalorder %v62, %v68
    %vm89 = vcmp.eq.s32.totalorder %v62, %v71
    %vm90 = vcmp.eq.s32.totalorder %v62, %v74
    %vm91 = vcmp.eq.s32.totalorder %v62, %v77
    %vm92 = vcmp.eq.s32.totalorder %v62, %v80
    %vm93 = vcmp.eq.s32.totalorder %v62, %v83
    %vm94 = vcmp.eq.s32.totalorder %v62, %v86
    %v95 = vsel %vm87, 1, 0
    %v96 = vsel %vm88, 1, 0
    %v97 = vsel %vm89, 1, 0
    %v98 = vsel %vm90, 1, 0
    %v99 = vsel %vm91, 1, 0
    %v100 = vsel %vm92, 1, 0
    %v101 = vsel %vm93, 1, 0
    %v102 = vsel %vm94, 1, 0
    %v103 = vcvt.s32.f32 %v95
    %v104 = vcvt.s32.f32 %v96
    %v105 = vcvt.s32.f32 %v97
    %v106 = vcvt.s32.f32 %v98
    %v107 = vcvt.s32.f32 %v99
    %v108 = vcvt.s32.f32 %v100
    %v109 = vcvt.s32.f32 %v101
    %v110 = vcvt.s32.f32 %v102
    %v111 = vld [vmem:[%s1] sm:$0xff]
    %v112 = vld [vmem:[%s1 + $0x8] sm:$0xff]
    %v113 = vld [vmem:[%s1 + $0x10] sm:$0xff]
    %v114 = vld [vmem:[%s1 + $0x18] sm:$0xff]
    %v115 = vld [vmem:[%s1 + $0x20] sm:$0xff]
    %v116 = vld [vmem:[%s1 + $0x28] sm:$0xff]
    %v117 = vld [vmem:[%s1 + $0x30] sm:$0xff]
    %v118 = vld [vmem:[%s1 + $0x38] sm:$0xff]
    %v119 = vld [vmem:[%s1 + $0x40] sm:$0xff]
    %v120 = vld [vmem:[%s1 + $0x48] sm:$0xff]
    %v121 = vld [vmem:[%s1 + $0x50] sm:$0xff]
    %v122 = vld [vmem:[%s1 + $0x58] sm:$0xff]
    %v123 = vld [vmem:[%s1 + $0x60] sm:$0xff]
    %v124 = vld [vmem:[%s1 + $0x68] sm:$0xff]
    %v125 = vld [vmem:[%s1 + $0x70] sm:$0xff]
    %v126 = vld [vmem:[%s1 + $0x78] sm:$0xff]
    %127 = vmatprep.subr.mxu0 0.0
    %v128 = vand.u32 %v111, 4294901760
    %129 = vmatpush1.msra.mxu0 %v128
    %130 = vmatprep.subr.mxu0 0.0
    %v131 = vand.u32 %v112, 4294901760
    %132 = vmatpush1.msra.mxu0 %v131
    %133 = vmatprep.subr.mxu0 0.0
    %v134 = vand.u32 %v113, 4294901760
    %135 = vmatpush1.msra.mxu0 %v134
    %136 = vmatprep.subr.mxu0 0.0
    %v137 = vand.u32 %v114, 4294901760
    %138 = vmatpush1.msra.mxu0 %v137
    %139 = vmatprep.subr.mxu0 0.0
    %v140 = vand.u32 %v115, 4294901760
    %141 = vmatpush1.msra.mxu0 %v140
    %142 = vmatprep.subr.mxu0 0.0
    %v143 = vand.u32 %v116, 4294901760
    %144 = vmatpush1.msra.mxu0 %v143
    %145 = vmatprep.subr.mxu0 0.0
    %v146 = vand.u32 %v117, 4294901760
    %147 = vmatpush1.msra.mxu0 %v146
    %148 = vmatprep.subr.mxu0 0.0
    %v149 = vand.u32 %v118, 4294901760
    %150 = vmatpush1.msra.mxu0 %v149
    %151 = vmatprep.subr.mxu0 0.0
    %v152 = vand.u32 %v119, 4294901760
    %153 = vmatpush1.msra.mxu0 %v152
    %154 = vmatprep.subr.mxu0 0.0
    %v155 = vand.u32 %v120, 4294901760
    %156 = vmatpush1.msra.mxu0 %v155
    %157 = vmatprep.subr.mxu0 0.0
    %v158 = vand.u32 %v121, 4294901760
    %159 = vmatpush1.msra.mxu0 %v158
    %160 = vmatprep.subr.mxu0 0.0
    %v161 = vand.u32 %v122, 4294901760
    %162 = vmatpush1.msra.mxu0 %v161
    %163 = vmatprep.subr.mxu0 0.0
    %v164 = vand.u32 %v123, 4294901760
    %165 = vmatpush1.msra.mxu0 %v164
    %166 = vmatprep.subr.mxu0 0.0
    %v167 = vand.u32 %v124, 4294901760
    %168 = vmatpush1.msra.mxu0 %v167
    %169 = vmatprep.subr.mxu0 0.0
    %v170 = vand.u32 %v125, 4294901760
    %171 = vmatpush1.msra.mxu0 %v170
    %172 = vmatprep.subr.mxu0 0.0
    %v173 = vand.u32 %v126, 4294901760
    %174 = vmatpush1.msra.mxu0 %v173
    %175 = vmatprep.subr.mxu0 0.0
    %176 = vmatpush1.msra.mxu0 0.0
    %177 = vmatprep.subr.mxu0 0.0
    %178 = vmatpush1.msra.mxu0 0.0
    %179 = vmatprep.subr.mxu0 0.0
    %180 = vmatpush1.msra.mxu0 0.0
    %181 = vmatprep.subr.mxu0 0.0
    %182 = vmatpush1.msra.mxu0 0.0
    %183 = vmatprep.subr.mxu0 0.0
    %184 = vmatpush1.msra.mxu0 0.0
    %185 = vmatprep.subr.mxu0 0.0
    %186 = vmatpush1.msra.mxu0 0.0
    %187 = vmatprep.subr.mxu0 0.0
    %188 = vmatpush1.msra.mxu0 0.0
    %189 = vmatprep.subr.mxu0 0.0
    %190 = vmatpush1.msra.mxu0 0.0
    %191 = vmatprep.subr.mxu0 0.0
    %192 = vmatpush1.msra.mxu0 0.0
    %193 = vmatprep.subr.mxu0 0.0
    %194 = vmatpush1.msra.mxu0 0.0
    %195 = vmatprep.subr.mxu0 0.0
    %196 = vmatpush1.msra.mxu0 0.0
    %197 = vmatprep.subr.mxu0 0.0
    %198 = vmatpush1.msra.mxu0 0.0
    %199 = vmatprep.subr.mxu0 0.0
    %200 = vmatpush1.msra.mxu0 0.0
    %201 = vmatprep.subr.mxu0 0.0
    %202 = vmatpush1.msra.mxu0 0.0
    %203 = vmatprep.subr.mxu0 0.0
    %204 = vmatpush1.msra.mxu0 0.0
    %205 = vmatprep.subr.mxu0 0.0
    %206 = vmatpush1.msra.mxu0 0.0
    %207 = vmatprep.mubr.f32.mxu0 0.0
    %v208 = vand.u32 %v103, 4294901760
    %v209 = vsub.f32 %v103, %v208
    %v210 = vand.u32 %v209, 4294901760
    %v211 = vsub.f32 %v209, %v210
    %v212 = vand.u32 %v211, 4294901760
    %213 = vmatmul.mubr.f32.gmra.mrb[0].mxu0 %v212
    %v214 = vpop.f32.mrb[0].mxu0
    %v215 = vadd.f32 0.0, %v214
    %v216 = vpop.f32.mrb[0].mxu0
    %217 = vmatprep.mubr.f32.mxu0 0.0
    %v218 = vand.u32 %v104, 4294901760
    %v219 = vsub.f32 %v104, %v218
    %v220 = vand.u32 %v219, 4294901760
    %v221 = vsub.f32 %v219, %v220
    %v222 = vand.u32 %v221, 4294901760
    %223 = vmatmul.mubr.f32.gmra.mrb[0].mxu0 %v222
    %v224 = vpop.f32.mrb[0].mxu0
    %v225 = vadd.f32 0.0, %v224
    %v226 = vpop.f32.mrb[0].mxu0
    %227 = vmatprep.mubr.f32.mxu0 0.0
    %v228 = vand.u32 %v105, 4294901760
    %v229 = vsub.f32 %v105, %v228
    %v230 = vand.u32 %v229, 4294901760
    %v231 = vsub.f32 %v229, %v230
    %v232 = vand.u32 %v231, 4294901760
    %233 = vmatmul.mubr.f32.gmra.mrb[0].mxu0 %v232
    %v234 = vpop.f32.mrb[0].mxu0
    %v235 = vadd.f32 0.0, %v234
    %v236 = vpop.f32.mrb[0].mxu0
    %237 = vmatprep.mubr.f32.mxu0 0.0
    %v238 = vand.u32 %v106, 4294901760
    %v239 = vsub.f32 %v106, %v238
    %v240 = vand.u32 %v239, 4294901760
    %v241 = vsub.f32 %v239, %v240
    %v242 = vand.u32 %v241, 4294901760
    %243 = vmatmul.mubr.f32.gmra.mrb[0].mxu0 %v242
    %v244 = vpop.f32.mrb[0].mxu0
    %v245 = vadd.f32 0.0, %v244
    %v246 = vpop.f32.mrb[0].mxu0
    %247 = vmatprep.mubr.f32.mxu0 0.0
    %v248 = vand.u32 %v107, 4294901760
    %v249 = vsub.f32 %v107, %v248
    %v250 = vand.u32 %v249, 4294901760
    %v251 = vsub.f32 %v249, %v250
    %v252 = vand.u32 %v251, 4294901760
    %253 = vmatmul.mubr.f32.gmra.mrb[0].mxu0 %v252
    %v254 = vpop.f32.mrb[0].mxu0
    %v255 = vadd.f32 0.0, %v254
    %v256 = vpop.f32.mrb[0].mxu0
    %257 = vmatprep.mubr.f32.mxu0 0.0
    %v258 = vand.u32 %v108, 4294901760
    %v259 = vsub.f32 %v108, %v258
    %v260 = vand.u32 %v259, 4294901760
    %v261 = vsub.f32 %v259, %v260
    %v262 = vand.u32 %v261, 4294901760
    %263 = vmatmul.mubr.f32.gmra.mrb[0].mxu0 %v262
    %v264 = vpop.f32.mrb[0].mxu0
    %v265 = vadd.f32 0.0, %v264
    %v266 = vpop.f32.mrb[0].mxu0
    %267 = vmatprep.mubr.f32.mxu0 0.0
    %v268 = vand.u32 %v109, 4294901760
    %v269 = vsub.f32 %v109, %v268
    %v270 = vand.u32 %v269, 4294901760
    %v271 = vsub.f32 %v269, %v270
    %v272 = vand.u32 %v271, 4294901760
    %273 = vmatmul.mubr.f32.gmra.mrb[0].mxu0 %v272
    %v274 = vpop.f32.mrb[0].mxu0
    %v275 = vadd.f32 0.0, %v274
    %v276 = vpop.f32.mrb[0].mxu0
    %277 = vmatprep.mubr.f32.mxu0 0.0
    %v278 = vand.u32 %v110, 4294901760
    %v279 = vsub.f32 %v110, %v278
    %v280 = vand.u32 %v279, 4294901760
    %v281 = vsub.f32 %v279, %v280
    %v282 = vand.u32 %v281, 4294901760
    %283 = vmatmul.mubr.f32.gmra.mrb[0].mxu0 %v282
    %v284 = vpop.f32.mrb[0].mxu0
    %v285 = vadd.f32 0.0, %v284
    %v286 = vpop.f32.mrb[0].mxu0
    %287 = vdwg.mxu0
    %288 = vmatprep.subr.mxu0 0.0
    %v289 = vand.u32 %v111, 4294901760
    %v290 = vsub.f32 %v111, %v289
    %v291 = vand.u32 %v290, 4294901760
    %v292 = vsub.f32 %v290, %v291
    %v293 = vand.u32 %v292, 4294901760
    %294 = vmatpush1.msra.mxu0 %v293
    %295 = vmatprep.subr.mxu0 0.0
    %v296 = vand.u32 %v112, 4294901760
    %v297 = vsub.f32 %v112, %v296
    %v298 = vand.u32 %v297, 4294901760
    %v299 = vsub.f32 %v297, %v298
    %v300 = vand.u32 %v299, 4294901760
    %301 = vmatpush1.msra.mxu0 %v300
    %302 = vmatprep.subr.mxu0 0.0
    %v303 = vand.u32 %v113, 4294901760
    %v304 = vsub.f32 %v113, %v303
    %v305 = vand.u32 %v304, 4294901760
    %v306 = vsub.f32 %v304, %v305
    %v307 = vand.u32 %v306, 4294901760
    %308 = vmatpush1.msra.mxu0 %v307
    %309 = vmatprep.subr.mxu0 0.0
    %v310 = vand.u32 %v114, 4294901760
    %v311 = vsub.f32 %v114, %v310
    %v312 = vand.u32 %v311, 4294901760
    %v313 = vsub.f32 %v311, %v312
    %v314 = vand.u32 %v313, 4294901760
    %315 = vmatpush1.msra.mxu0 %v314
    %316 = vmatprep.subr.mxu0 0.0
    %v317 = vand.u32 %v115, 4294901760
    %v318 = vsub.f32 %v115, %v317
    %v319 = vand.u32 %v318, 4294901760
    %v320 = vsub.f32 %v318, %v319
    %v321 = vand.u32 %v320, 4294901760
    %322 = vmatpush1.msra.mxu0 %v321
    %323 = vmatprep.subr.mxu0 0.0
    %v324 = vand.u32 %v116, 4294901760
    %v325 = vsub.f32 %v116, %v324
    %v326 = vand.u32 %v325, 4294901760
    %v327 = vsub.f32 %v325, %v326
    %v328 = vand.u32 %v327, 4294901760
    %329 = vmatpush1.msra.mxu0 %v328
    %330 = vmatprep.subr.mxu0 0.0
    %v331 = vand.u32 %v117, 4294901760
    %v332 = vsub.f32 %v117, %v331
    %v333 = vand.u32 %v332, 4294901760
    %v334 = vsub.f32 %v332, %v333
    %v335 = vand.u32 %v334, 4294901760
    %336 = vmatpush1.msra.mxu0 %v335
    %337 = vmatprep.subr.mxu0 0.0
    %v338 = vand.u32 %v118, 4294901760
    %v339 = vsub.f32 %v118, %v338
    %v340 = vand.u32 %v339, 4294901760
    %v341 = vsub.f32 %v339, %v340
    %v342 = vand.u32 %v341, 4294901760
    %343 = vmatpush1.msra.mxu0 %v342
    %344 = vmatprep.subr.mxu0 0.0
    %v345 = vand.u32 %v119, 4294901760
    %v346 = vsub.f32 %v119, %v345
    %v347 = vand.u32 %v346, 4294901760
    %v348 = vsub.f32 %v346, %v347
    %v349 = vand.u32 %v348, 4294901760
    %350 = vmatpush1.msra.mxu0 %v349
    %351 = vmatprep.subr.mxu0 0.0
    %v352 = vand.u32 %v120, 4294901760
    %v353 = vsub.f32 %v120, %v352
    %v354 = vand.u32 %v353, 4294901760
    %v355 = vsub.f32 %v353, %v354
    %v356 = vand.u32 %v355, 4294901760
    %357 = vmatpush1.msra.mxu0 %v356
    %358 = vmatprep.subr.mxu0 0.0
    %v359 = vand.u32 %v121, 4294901760
    %v360 = vsub.f32 %v121, %v359
    %v361 = vand.u32 %v360, 4294901760
    %v362 = vsub.f32 %v360, %v361
    %v363 = vand.u32 %v362, 4294901760
    %364 = vmatpush1.msra.mxu0 %v363
    %365 = vmatprep.subr.mxu0 0.0
    %v366 = vand.u32 %v122, 4294901760
    %v367 = vsub.f32 %v122, %v366
    %v368 = vand.u32 %v367, 4294901760
    %v369 = vsub.f32 %v367, %v368
    %v370 = vand.u32 %v369, 4294901760
    %371 = vmatpush1.msra.mxu0 %v370
    %372 = vmatprep.subr.mxu0 0.0
    %v373 = vand.u32 %v123, 4294901760
    %v374 = vsub.f32 %v123, %v373
    %v375 = vand.u32 %v374, 4294901760
    %v376 = vsub.f32 %v374, %v375
    %v377 = vand.u32 %v376, 4294901760
    %378 = vmatpush1.msra.mxu0 %v377
    %379 = vmatprep.subr.mxu0 0.0
    %v380 = vand.u32 %v124, 4294901760
    %v381 = vsub.f32 %v124, %v380
    %v382 = vand.u32 %v381, 4294901760
    %v383 = vsub.f32 %v381, %v382
    %v384 = vand.u32 %v383, 4294901760
    %385 = vmatpush1.msra.mxu0 %v384
    %386 = vmatprep.subr.mxu0 0.0
    %v387 = vand.u32 %v125, 4294901760
    %v388 = vsub.f32 %v125, %v387
    %v389 = vand.u32 %v388, 4294901760
    %v390 = vsub.f32 %v388, %v389
    %v391 = vand.u32 %v390, 4294901760
    %392 = vmatpush1.msra.mxu0 %v391
    %393 = vmatprep.subr.mxu0 0.0
    %v394 = vand.u32 %v126, 4294901760
    %v395 = vsub.f32 %v126, %v394
    %v396 = vand.u32 %v395, 4294901760
    %v397 = vsub.f32 %v395, %v396
    %v398 = vand.u32 %v397, 4294901760
    %399 = vmatpush1.msra.mxu0 %v398
    %400 = vmatprep.subr.mxu0 0.0
    %401 = vmatpush1.msra.mxu0 0.0
    %402 = vmatprep.subr.mxu0 0.0
    %403 = vmatpush1.msra.mxu0 0.0
    %404 = vmatprep.subr.mxu0 0.0
    %405 = vmatpush1.msra.mxu0 0.0
    %406 = vmatprep.subr.mxu0 0.0
    %407 = vmatpush1.msra.mxu0 0.0
    %408 = vmatprep.subr.mxu0 0.0
    %409 = vmatpush1.msra.mxu0 0.0
    %410 = vmatprep.subr.mxu0 0.0
    %411 = vmatpush1.msra.mxu0 0.0
    %412 = vmatprep.subr.mxu0 0.0
    %413 = vmatpush1.msra.mxu0 0.0
    %414 = vmatprep.subr.mxu0 0.0
    %415 = vmatpush1.msra.mxu0 0.0
    %416 = vmatprep.subr.mxu0 0.0
    %417 = vmatpush1.msra.mxu0 0.0
    %418 = vmatprep.subr.mxu0 0.0
    %419 = vmatpush1.msra.mxu0 0.0
    %420 = vmatprep.subr.mxu0 0.0
    %421 = vmatpush1.msra.mxu0 0.0
    %422 = vmatprep.subr.mxu0 0.0
    %423 = vmatpush1.msra.mxu0 0.0
    %424 = vmatprep.subr.mxu0 0.0
    %425 = vmatpush1.msra.mxu0 0.0
    %426 = vmatprep.subr.mxu0 0.0
    %427 = vmatpush1.msra.mxu0 0.0
    %428 = vmatprep.subr.mxu0 0.0
    %429 = vmatpush1.msra.mxu0 0.0
    %430 = vmatprep.subr.mxu0 0.0
    %431 = vmatpush1.msra.mxu0 0.0
    %432 = vmatprep.mubr.f32.mxu0 0.0
    %v433 = vand.u32 %v103, 4294901760
    %434 = vmatmul.mubr.f32.gmra.mrb[0].mxu0 %v433
    %v435 = vpop.f32.mrb[0].mxu0
    %v436 = vadd.f32 %v215, %v435
    %v437 = vpop.f32.mrb[0].mxu0
    %438 = vmatprep.mubr.f32.mxu0 0.0
    %v439 = vand.u32 %v104, 4294901760
    %440 = vmatmul.mubr.f32.gmra.mrb[0].mxu0 %v439
    %v441 = vpop.f32.mrb[0].mxu0
    %v442 = vadd.f32 %v225, %v441
    %v443 = vpop.f32.mrb[0].mxu0
    %444 = vmatprep.mubr.f32.mxu0 0.0
    %v445 = vand.u32 %v105, 4294901760
    %446 = vmatmul.mubr.f32.gmra.mrb[0].mxu0 %v445
    %v447 = vpop.f32.mrb[0].mxu0
    %v448 = vadd.f32 %v235, %v447
    %v449 = vpop.f32.mrb[0].mxu0
    %450 = vmatprep.mubr.f32.mxu0 0.0
    %v451 = vand.u32 %v106, 4294901760
    %452 = vmatmul.mubr.f32.gmra.mrb[0].mxu0 %v451
    %v453 = vpop.f32.mrb[0].mxu0
    %v454 = vadd.f32 %v245, %v453
    %v455 = vpop.f32.mrb[0].mxu0
    %456 = vmatprep.mubr.f32.mxu0 0.0
    %v457 = vand.u32 %v107, 4294901760
    %458 = vmatmul.mubr.f32.gmra.mrb[0].mxu0 %v457
    %v459 = vpop.f32.mrb[0].mxu0
    %v460 = vadd.f32 %v255, %v459
    %v461 = vpop.f32.mrb[0].mxu0
    %462 = vmatprep.mubr.f32.mxu0 0.0
    %v463 = vand.u32 %v108, 4294901760
    %464 = vmatmul.mubr.f32.gmra.mrb[0].mxu0 %v463
    %v465 = vpop.f32.mrb[0].mxu0
    %v466 = vadd.f32 %v265, %v465
    %v467 = vpop.f32.mrb[0].mxu0
    %468 = vmatprep.mubr.f32.mxu0 0.0
    %v469 = vand.u32 %v109, 4294901760
    %470 = vmatmul.mubr.f32.gmra.mrb[0].mxu0 %v469
    %v471 = vpop.f32.mrb[0].mxu0
    %v472 = vadd.f32 %v275, %v471
    %v473 = vpop.f32.mrb[0].mxu0
    %474 = vmatprep.mubr.f32.mxu0 0.0
    %v475 = vand.u32 %v110, 4294901760
    %476 = vmatmul.mubr.f32.gmra.mrb[0].mxu0 %v475
    %v477 = vpop.f32.mrb[0].mxu0
    %v478 = vadd.f32 %v285, %v477
    %v479 = vpop.f32.mrb[0].mxu0
    %480 = vdwg.mxu0
    %481 = vmatprep.subr.mxu0 0.0
    %v482 = vand.u32 %v111, 4294901760
    %v483 = vsub.f32 %v111, %v482
    %484 = vmatpush1.msra.mxu0 %v483
    %485 = vmatprep.subr.mxu0 0.0
    %v486 = vand.u32 %v112, 4294901760
    %v487 = vsub.f32 %v112, %v486
    %488 = vmatpush1.msra.mxu0 %v487
    %489 = vmatprep.subr.mxu0 0.0
    %v490 = vand.u32 %v113, 4294901760
    %v491 = vsub.f32 %v113, %v490
    %492 = vmatpush1.msra.mxu0 %v491
    %493 = vmatprep.subr.mxu0 0.0
    %v494 = vand.u32 %v114, 4294901760
    %v495 = vsub.f32 %v114, %v494
    %496 = vmatpush1.msra.mxu0 %v495
    %497 = vmatprep.subr.mxu0 0.0
    %v498 = vand.u32 %v115, 4294901760
    %v499 = vsub.f32 %v115, %v498
    %500 = vmatpush1.msra.mxu0 %v499
    %501 = vmatprep.subr.mxu0 0.0
    %v502 = vand.u32 %v116, 4294901760
    %v503 = vsub.f32 %v116, %v502
    %504 = vmatpush1.msra.mxu0 %v503
    %505 = vmatprep.subr.mxu0 0.0
    %v506 = vand.u32 %v117, 4294901760
    %v507 = vsub.f32 %v117, %v506
    %508 = vmatpush1.msra.mxu0 %v507
    %509 = vmatprep.subr.mxu0 0.0
    %v510 = vand.u32 %v118, 4294901760
    %v511 = vsub.f32 %v118, %v510
    %512 = vmatpush1.msra.mxu0 %v511
    %513 = vmatprep.subr.mxu0 0.0
    %v514 = vand.u32 %v119, 4294901760
    %v515 = vsub.f32 %v119, %v514
    %516 = vmatpush1.msra.mxu0 %v515
    %517 = vmatprep.subr.mxu0 0.0
    %v518 = vand.u32 %v120, 4294901760
    %v519 = vsub.f32 %v120, %v518
    %520 = vmatpush1.msra.mxu0 %v519
    %521 = vmatprep.subr.mxu0 0.0
    %v522 = vand.u32 %v121, 4294901760
    %v523 = vsub.f32 %v121, %v522
    %524 = vmatpush1.msra.mxu0 %v523
    %525 = vmatprep.subr.mxu0 0.0
    %v526 = vand.u32 %v122, 4294901760
    %v527 = vsub.f32 %v122, %v526
    %528 = vmatpush1.msra.mxu0 %v527
    %529 = vmatprep.subr.mxu0 0.0
    %v530 = vand.u32 %v123, 4294901760
    %v531 = vsub.f32 %v123, %v530
    %532 = vmatpush1.msra.mxu0 %v531
    %533 = vmatprep.subr.mxu0 0.0
    %v534 = vand.u32 %v124, 4294901760
    %v535 = vsub.f32 %v124, %v534
    %536 = vmatpush1.msra.mxu0 %v535
    %537 = vmatprep.subr.mxu0 0.0
    %v538 = vand.u32 %v125, 4294901760
    %v539 = vsub.f32 %v125, %v538
    %540 = vmatpush1.msra.mxu0 %v539
    %541 = vmatprep.subr.mxu0 0.0
    %v542 = vand.u32 %v126, 4294901760
    %v543 = vsub.f32 %v126, %v542
    %544 = vmatpush1.msra.mxu0 %v543
    %545 = vmatprep.subr.mxu0 0.0
    %546 = vmatpush1.msra.mxu0 0.0
    %547 = vmatprep.subr.mxu0 0.0
    %548 = vmatpush1.msra.mxu0 0.0
    %549 = vmatprep.subr.mxu0 0.0
    %550 = vmatpush1.msra.mxu0 0.0
    %551 = vmatprep.subr.mxu0 0.0
    %552 = vmatpush1.msra.mxu0 0.0
    %553 = vmatprep.subr.mxu0 0.0
    %554 = vmatpush1.msra.mxu0 0.0
    %555 = vmatprep.subr.mxu0 0.0
    %556 = vmatpush1.msra.mxu0 0.0
    %557 = vmatprep.subr.mxu0 0.0
    %558 = vmatpush1.msra.mxu0 0.0
    %559 = vmatprep.subr.mxu0 0.0
    %560 = vmatpush1.msra.mxu0 0.0
    %561 = vmatprep.subr.mxu0 0.0
    %562 = vmatpush1.msra.mxu0 0.0
    %563 = vmatprep.subr.mxu0 0.0
    %564 = vmatpush1.msra.mxu0 0.0
    %565 = vmatprep.subr.mxu0 0.0
    %566 = vmatpush1.msra.mxu0 0.0
    %567 = vmatprep.subr.mxu0 0.0
    %568 = vmatpush1.msra.mxu0 0.0
    %569 = vmatprep.subr.mxu0 0.0
    %570 = vmatpush1.msra.mxu0 0.0
    %571 = vmatprep.subr.mxu0 0.0
    %572 = vmatpush1.msra.mxu0 0.0
    %573 = vmatprep.subr.mxu0 0.0
    %574 = vmatpush1.msra.mxu0 0.0
    %575 = vmatprep.subr.mxu0 0.0
    %576 = vmatpush1.msra.mxu0 0.0
    %577 = vmatprep.mubr.f32.mxu0 0.0
    %v578 = vand.u32 %v103, 4294901760
    %v579 = vsub.f32 %v103, %v578
    %580 = vmatmul.mubr.f32.gmra.mrb[0].mxu0 %v579
    %v581 = vpop.f32.mrb[0].mxu0
    %v582 = vadd.f32 %v436, %v581
    %v583 = vpop.f32.mrb[0].mxu0
    %584 = vmatprep.mubr.f32.mxu0 0.0
    %v585 = vand.u32 %v104, 4294901760
    %v586 = vsub.f32 %v104, %v585
    %587 = vmatmul.mubr.f32.gmra.mrb[0].mxu0 %v586
    %v588 = vpop.f32.mrb[0].mxu0
    %v589 = vadd.f32 %v442, %v588
    %v590 = vpop.f32.mrb[0].mxu0
    %591 = vmatprep.mubr.f32.mxu0 0.0
    %v592 = vand.u32 %v105, 4294901760
    %v593 = vsub.f32 %v105, %v592
    %594 = vmatmul.mubr.f32.gmra.mrb[0].mxu0 %v593
    %v595 = vpop.f32.mrb[0].mxu0
    %v596 = vadd.f32 %v448, %v595
    %v597 = vpop.f32.mrb[0].mxu0
    %598 = vmatprep.mubr.f32.mxu0 0.0
    %v599 = vand.u32 %v106, 4294901760
    %v600 = vsub.f32 %v106, %v599
    %601 = vmatmul.mubr.f32.gmra.mrb[0].mxu0 %v600
    %v602 = vpop.f32.mrb[0].mxu0
    %v603 = vadd.f32 %v454, %v602
    %v604 = vpop.f32.mrb[0].mxu0
    %605 = vmatprep.mubr.f32.mxu0 0.0
    %v606 = vand.u32 %v107, 4294901760
    %v607 = vsub.f32 %v107, %v606
    %608 = vmatmul.mubr.f32.gmra.mrb[0].mxu0 %v607
    %v609 = vpop.f32.mrb[0].mxu0
    %v610 = vadd.f32 %v460, %v609
    %v611 = vpop.f32.mrb[0].mxu0
    %612 = vmatprep.mubr.f32.mxu0 0.0
    %v613 = vand.u32 %v108, 4294901760
    %v614 = vsub.f32 %v108, %v613
    %615 = vmatmul.mubr.f32.gmra.mrb[0].mxu0 %v614
    %v616 = vpop.f32.mrb[0].mxu0
    %v617 = vadd.f32 %v466, %v616
    %v618 = vpop.f32.mrb[0].mxu0
    %619 = vmatprep.mubr.f32.mxu0 0.0
    %v620 = vand.u32 %v109, 4294901760
    %v621 = vsub.f32 %v109, %v620
    %622 = vmatmul.mubr.f32.gmra.mrb[0].mxu0 %v621
    %v623 = vpop.f32.mrb[0].mxu0
    %v624 = vadd.f32 %v472, %v623
    %v625 = vpop.f32.mrb[0].mxu0
    %626 = vmatprep.mubr.f32.mxu0 0.0
    %v627 = vand.u32 %v110, 4294901760
    %v628 = vsub.f32 %v110, %v627
    %629 = vmatmul.mubr.f32.gmra.mrb[0].mxu0 %v628
    %v630 = vpop.f32.mrb[0].mxu0
    %v631 = vadd.f32 %v478, %v630
    %v632 = vpop.f32.mrb[0].mxu0
    %633 = vdwg.mxu0
    %634 = vmatprep.subr.mxu0 0.0
    %v635 = vand.u32 %v111, 4294901760
    %636 = vmatpush1.msra.mxu0 %v635
    %637 = vmatprep.subr.mxu0 0.0
    %v638 = vand.u32 %v112, 4294901760
    %639 = vmatpush1.msra.mxu0 %v638
    %640 = vmatprep.subr.mxu0 0.0
    %v641 = vand.u32 %v113, 4294901760
    %642 = vmatpush1.msra.mxu0 %v641
    %643 = vmatprep.subr.mxu0 0.0
    %v644 = vand.u32 %v114, 4294901760
    %645 = vmatpush1.msra.mxu0 %v644
    %646 = vmatprep.subr.mxu0 0.0
    %v647 = vand.u32 %v115, 4294901760
    %648 = vmatpush1.msra.mxu0 %v647
    %649 = vmatprep.subr.mxu0 0.0
    %v650 = vand.u32 %v116, 4294901760
    %651 = vmatpush1.msra.mxu0 %v650
    %652 = vmatprep.subr.mxu0 0.0
    %v653 = vand.u32 %v117, 4294901760
    %654 = vmatpush1.msra.mxu0 %v653
    %655 = vmatprep.subr.mxu0 0.0
    %v656 = vand.u32 %v118, 4294901760
    %657 = vmatpush1.msra.mxu0 %v656
    %658 = vmatprep.subr.mxu0 0.0
    %v659 = vand.u32 %v119, 4294901760
    %660 = vmatpush1.msra.mxu0 %v659
    %661 = vmatprep.subr.mxu0 0.0
    %v662 = vand.u32 %v120, 4294901760
    %663 = vmatpush1.msra.mxu0 %v662
    %664 = vmatprep.subr.mxu0 0.0
    %v665 = vand.u32 %v121, 4294901760
    %666 = vmatpush1.msra.mxu0 %v665
    %667 = vmatprep.subr.mxu0 0.0
    %v668 = vand.u32 %v122, 4294901760
    %669 = vmatpush1.msra.mxu0 %v668
    %670 = vmatprep.subr.mxu0 0.0
    %v671 = vand.u32 %v123, 4294901760
    %672 = vmatpush1.msra.mxu0 %v671
    %673 = vmatprep.subr.mxu0 0.0
    %v674 = vand.u32 %v124, 4294901760
    %675 = vmatpush1.msra.mxu0 %v674
    %676 = vmatprep.subr.mxu0 0.0
    %v677 = vand.u32 %v125, 4294901760
    %678 = vmatpush1.msra.mxu0 %v677
    %679 = vmatprep.subr.mxu0 0.0
    %v680 = vand.u32 %v126, 4294901760
    %681 = vmatpush1.msra.mxu0 %v680
    %682 = vmatprep.subr.mxu0 0.0
    %683 = vmatpush1.msra.mxu0 0.0
    %684 = vmatprep.subr.mxu0 0.0
    %685 = vmatpush1.msra.mxu0 0.0
    %686 = vmatprep.subr.mxu0 0.0
    %687 = vmatpush1.msra.mxu0 0.0
    %688 = vmatprep.subr.mxu0 0.0
    %689 = vmatpush1.msra.mxu0 0.0
    %690 = vmatprep.subr.mxu0 0.0
    %691 = vmatpush1.msra.mxu0 0.0
    %692 = vmatprep.subr.mxu0 0.0
    %693 = vmatpush1.msra.mxu0 0.0
    %694 = vmatprep.subr.mxu0 0.0
    %695 = vmatpush1.msra.mxu0 0.0
    %696 = vmatprep.subr.mxu0 0.0
    %697 = vmatpush1.msra.mxu0 0.0
    %698 = vmatprep.subr.mxu0 0.0
    %699 = vmatpush1.msra.mxu0 0.0
    %700 = vmatprep.subr.mxu0 0.0
    %701 = vmatpush1.msra.mxu0 0.0
    %702 = vmatprep.subr.mxu0 0.0
    %703 = vmatpush1.msra.mxu0 0.0
    %704 = vmatprep.subr.mxu0 0.0
    %705 = vmatpush1.msra.mxu0 0.0
    %706 = vmatprep.subr.mxu0 0.0
    %707 = vmatpush1.msra.mxu0 0.0
    %708 = vmatprep.subr.mxu0 0.0
    %709 = vmatpush1.msra.mxu0 0.0
    %710 = vmatprep.subr.mxu0 0.0
    %711 = vmatpush1.msra.mxu0 0.0
    %712 = vmatprep.subr.mxu0 0.0
    %713 = vmatpush1.msra.mxu0 0.0
    %714 = vmatprep.mubr.f32.mxu0 0.0
    %v715 = vand.u32 %v103, 4294901760
    %v716 = vsub.f32 %v103, %v715
    %v717 = vand.u32 %v716, 4294901760
    %718 = vmatmul.mubr.f32.gmra.mrb[0].mxu0 %v717
    %v719 = vpop.f32.mrb[0].mxu0
    %v720 = vadd.f32 %v582, %v719
    %v721 = vpop.f32.mrb[0].mxu0
    %722 = vmatprep.mubr.f32.mxu0 0.0
    %v723 = vand.u32 %v104, 4294901760
    %v724 = vsub.f32 %v104, %v723
    %v725 = vand.u32 %v724, 4294901760
    %726 = vmatmul.mubr.f32.gmra.mrb[0].mxu0 %v725
    %v727 = vpop.f32.mrb[0].mxu0
    %v728 = vadd.f32 %v589, %v727
    %v729 = vpop.f32.mrb[0].mxu0
    %730 = vmatprep.mubr.f32.mxu0 0.0
    %v731 = vand.u32 %v105, 4294901760
    %v732 = vsub.f32 %v105, %v731
    %v733 = vand.u32 %v732, 4294901760
    %734 = vmatmul.mubr.f32.gmra.mrb[0].mxu0 %v733
    %v735 = vpop.f32.mrb[0].mxu0
    %v736 = vadd.f32 %v596, %v735
    %v737 = vpop.f32.mrb[0].mxu0
    %738 = vmatprep.mubr.f32.mxu0 0.0
    %v739 = vand.u32 %v106, 4294901760
    %v740 = vsub.f32 %v106, %v739
    %v741 = vand.u32 %v740, 4294901760
    %742 = vmatmul.mubr.f32.gmra.mrb[0].mxu0 %v741
    %v743 = vpop.f32.mrb[0].mxu0
    %v744 = vadd.f32 %v603, %v743
    %v745 = vpop.f32.mrb[0].mxu0
    %746 = vmatprep.mubr.f32.mxu0 0.0
    %v747 = vand.u32 %v107, 4294901760
    %v748 = vsub.f32 %v107, %v747
    %v749 = vand.u32 %v748, 4294901760
    %750 = vmatmul.mubr.f32.gmra.mrb[0].mxu0 %v749
    %v751 = vpop.f32.mrb[0].mxu0
    %v752 = vadd.f32 %v610, %v751
    %v753 = vpop.f32.mrb[0].mxu0
    %754 = vmatprep.mubr.f32.mxu0 0.0
    %v755 = vand.u32 %v108, 4294901760
    %v756 = vsub.f32 %v108, %v755
    %v757 = vand.u32 %v756, 4294901760
    %758 = vmatmul.mubr.f32.gmra.mrb[0].mxu0 %v757
    %v759 = vpop.f32.mrb[0].mxu0
    %v760 = vadd.f32 %v617, %v759
    %v761 = vpop.f32.mrb[0].mxu0
    %762 = vmatprep.mubr.f32.mxu0 0.0
    %v763 = vand.u32 %v109, 4294901760
    %v764 = vsub.f32 %v109, %v763
    %v765 = vand.u32 %v764, 4294901760
    %766 = vmatmul.mubr.f32.gmra.mrb[0].mxu0 %v765
    %v767 = vpop.f32.mrb[0].mxu0
    %v768 = vadd.f32 %v624, %v767
    %v769 = vpop.f32.mrb[0].mxu0
    %770 = vmatprep.mubr.f32.mxu0 0.0
    %v771 = vand.u32 %v110, 4294901760
    %v772 = vsub.f32 %v110, %v771
    %v773 = vand.u32 %v772, 4294901760
    %774 = vmatmul.mubr.f32.gmra.mrb[0].mxu0 %v773
    %v775 = vpop.f32.mrb[0].mxu0
    %v776 = vadd.f32 %v631, %v775
    %v777 = vpop.f32.mrb[0].mxu0
    %778 = vdwg.mxu0
    %779 = vmatprep.subr.mxu0 0.0
    %v780 = vand.u32 %v111, 4294901760
    %v781 = vsub.f32 %v111, %v780
    %v782 = vand.u32 %v781, 4294901760
    %783 = vmatpush1.msra.mxu0 %v782
    %784 = vmatprep.subr.mxu0 0.0
    %v785 = vand.u32 %v112, 4294901760
    %v786 = vsub.f32 %v112, %v785
    %v787 = vand.u32 %v786, 4294901760
    %788 = vmatpush1.msra.mxu0 %v787
    %789 = vmatprep.subr.mxu0 0.0
    %v790 = vand.u32 %v113, 4294901760
    %v791 = vsub.f32 %v113, %v790
    %v792 = vand.u32 %v791, 4294901760
    %793 = vmatpush1.msra.mxu0 %v792
    %794 = vmatprep.subr.mxu0 0.0
    %v795 = vand.u32 %v114, 4294901760
    %v796 = vsub.f32 %v114, %v795
    %v797 = vand.u32 %v796, 4294901760
    %798 = vmatpush1.msra.mxu0 %v797
    %799 = vmatprep.subr.mxu0 0.0
    %v800 = vand.u32 %v115, 4294901760
    %v801 = vsub.f32 %v115, %v800
    %v802 = vand.u32 %v801, 4294901760
    %803 = vmatpush1.msra.mxu0 %v802
    %804 = vmatprep.subr.mxu0 0.0
    %v805 = vand.u32 %v116, 4294901760
    %v806 = vsub.f32 %v116, %v805
    %v807 = vand.u32 %v806, 4294901760
    %808 = vmatpush1.msra.mxu0 %v807
    %809 = vmatprep.subr.mxu0 0.0
    %v810 = vand.u32 %v117, 4294901760
    %v811 = vsub.f32 %v117, %v810
    %v812 = vand.u32 %v811, 4294901760
    %813 = vmatpush1.msra.mxu0 %v812
    %814 = vmatprep.subr.mxu0 0.0
    %v815 = vand.u32 %v118, 4294901760
    %v816 = vsub.f32 %v118, %v815
    %v817 = vand.u32 %v816, 4294901760
    %818 = vmatpush1.msra.mxu0 %v817
    %819 = vmatprep.subr.mxu0 0.0
    %v820 = vand.u32 %v119, 4294901760
    %v821 = vsub.f32 %v119, %v820
    %v822 = vand.u32 %v821, 4294901760
    %823 = vmatpush1.msra.mxu0 %v822
    %824 = vmatprep.subr.mxu0 0.0
    %v825 = vand.u32 %v120, 4294901760
    %v826 = vsub.f32 %v120, %v825
    %v827 = vand.u32 %v826, 4294901760
    %828 = vmatpush1.msra.mxu0 %v827
    %829 = vmatprep.subr.mxu0 0.0
    %v830 = vand.u32 %v121, 4294901760
    %v831 = vsub.f32 %v121, %v830
    %v832 = vand.u32 %v831, 4294901760
    %833 = vmatpush1.msra.mxu0 %v832
    %834 = vmatprep.subr.mxu0 0.0
    %v835 = vand.u32 %v122, 4294901760
    %v836 = vsub.f32 %v122, %v835
    %v837 = vand.u32 %v836, 4294901760
    %838 = vmatpush1.msra.mxu0 %v837
    %839 = vmatprep.subr.mxu0 0.0
    %v840 = vand.u32 %v123, 4294901760
    %v841 = vsub.f32 %v123, %v840
    %v842 = vand.u32 %v841, 4294901760
    %843 = vmatpush1.msra.mxu0 %v842
    %844 = vmatprep.subr.mxu0 0.0
    %v845 = vand.u32 %v124, 4294901760
    %v846 = vsub.f32 %v124, %v845
    %v847 = vand.u32 %v846, 4294901760
    %848 = vmatpush1.msra.mxu0 %v847
    %849 = vmatprep.subr.mxu0 0.0
    %v850 = vand.u32 %v125, 4294901760
    %v851 = vsub.f32 %v125, %v850
    %v852 = vand.u32 %v851, 4294901760
    %853 = vmatpush1.msra.mxu0 %v852
    %854 = vmatprep.subr.mxu0 0.0
    %v855 = vand.u32 %v126, 4294901760
    %v856 = vsub.f32 %v126, %v855
    %v857 = vand.u32 %v856, 4294901760
    %858 = vmatpush1.msra.mxu0 %v857
    %859 = vmatprep.subr.mxu0 0.0
    %860 = vmatpush1.msra.mxu0 0.0
    %861 = vmatprep.subr.mxu0 0.0
    %862 = vmatpush1.msra.mxu0 0.0
    %863 = vmatprep.subr.mxu0 0.0
    %864 = vmatpush1.msra.mxu0 0.0
    %865 = vmatprep.subr.mxu0 0.0
    %866 = vmatpush1.msra.mxu0 0.0
    %867 = vmatprep.subr.mxu0 0.0
    %868 = vmatpush1.msra.mxu0 0.0
    %869 = vmatprep.subr.mxu0 0.0
    %870 = vmatpush1.msra.mxu0 0.0
    %871 = vmatprep.subr.mxu0 0.0
    %872 = vmatpush1.msra.mxu0 0.0
    %873 = vmatprep.subr.mxu0 0.0
    %874 = vmatpush1.msra.mxu0 0.0
    %875 = vmatprep.subr.mxu0 0.0
    %876 = vmatpush1.msra.mxu0 0.0
    %877 = vmatprep.subr.mxu0 0.0
    %878 = vmatpush1.msra.mxu0 0.0
    %879 = vmatprep.subr.mxu0 0.0
    %880 = vmatpush1.msra.mxu0 0.0
    %881 = vmatprep.subr.mxu0 0.0
    %882 = vmatpush1.msra.mxu0 0.0
    %883 = vmatprep.subr.mxu0 0.0
    %884 = vmatpush1.msra.mxu0 0.0
    %885 = vmatprep.subr.mxu0 0.0
    %886 = vmatpush1.msra.mxu0 0.0
    %887 = vmatprep.subr.mxu0 0.0
    %888 = vmatpush1.msra.mxu0 0.0
    %889 = vmatprep.subr.mxu0 0.0
    %890 = vmatpush1.msra.mxu0 0.0
    %891 = vmatprep.mubr.f32.mxu0 0.0
    %v892 = vand.u32 %v103, 4294901760
    %893 = vmatmul.mubr.f32.gmra.mrb[0].mxu0 %v892
    %v894 = vpop.f32.mrb[0].mxu0
    %v895 = vadd.f32 %v720, %v894
    %v896 = vpop.f32.mrb[0].mxu0
    %897 = vmatprep.mubr.f32.mxu0 0.0
    %v898 = vand.u32 %v104, 4294901760
    %899 = vmatmul.mubr.f32.gmra.mrb[0].mxu0 %v898
    %v900 = vpop.f32.mrb[0].mxu0
    %v901 = vadd.f32 %v728, %v900
    %v902 = vpop.f32.mrb[0].mxu0
    %903 = vmatprep.mubr.f32.mxu0 0.0
    %v904 = vand.u32 %v105, 4294901760
    %905 = vmatmul.mubr.f32.gmra.mrb[0].mxu0 %v904
    %v906 = vpop.f32.mrb[0].mxu0
    %v907 = vadd.f32 %v736, %v906
    %v908 = vpop.f32.mrb[0].mxu0
    %909 = vmatprep.mubr.f32.mxu0 0.0
    %v910 = vand.u32 %v106, 4294901760
    %911 = vmatmul.mubr.f32.gmra.mrb[0].mxu0 %v910
    %v912 = vpop.f32.mrb[0].mxu0
    %v913 = vadd.f32 %v744, %v912
    %v914 = vpop.f32.mrb[0].mxu0
    %915 = vmatprep.mubr.f32.mxu0 0.0
    %v916 = vand.u32 %v107, 4294901760
    %917 = vmatmul.mubr.f32.gmra.mrb[0].mxu0 %v916
    %v918 = vpop.f32.mrb[0].mxu0
    %v919 = vadd.f32 %v752, %v918
    %v920 = vpop.f32.mrb[0].mxu0
    %921 = vmatprep.mubr.f32.mxu0 0.0
    %v922 = vand.u32 %v108, 4294901760
    %923 = vmatmul.mubr.f32.gmra.mrb[0].mxu0 %v922
    %v924 = vpop.f32.mrb[0].mxu0
    %v925 = vadd.f32 %v760, %v924
    %v926 = vpop.f32.mrb[0].mxu0
    %927 = vmatprep.mubr.f32.mxu0 0.0
    %v928 = vand.u32 %v109, 4294901760
    %929 = vmatmul.mubr.f32.gmra.mrb[0].mxu0 %v928
    %v930 = vpop.f32.mrb[0].mxu0
    %v931 = vadd.f32 %v768, %v930
    %v932 = vpop.f32.mrb[0].mxu0
    %933 = vmatprep.mubr.f32.mxu0 0.0
    %v934 = vand.u32 %v110, 4294901760
    %935 = vmatmul.mubr.f32.gmra.mrb[0].mxu0 %v934
    %v936 = vpop.f32.mrb[0].mxu0
    %v937 = vadd.f32 %v776, %v936
    %v938 = vpop.f32.mrb[0].mxu0
    %939 = vdwg.mxu0
    %940 = vmatprep.subr.mxu0 0.0
    %v941 = vand.u32 %v111, 4294901760
    %942 = vmatpush1.msra.mxu0 %v941
    %943 = vmatprep.subr.mxu0 0.0
    %v944 = vand.u32 %v112, 4294901760
    %945 = vmatpush1.msra.mxu0 %v944
    %946 = vmatprep.subr.mxu0 0.0
    %v947 = vand.u32 %v113, 4294901760
    %948 = vmatpush1.msra.mxu0 %v947
    %949 = vmatprep.subr.mxu0 0.0
    %v950 = vand.u32 %v114, 4294901760
    %951 = vmatpush1.msra.mxu0 %v950
    %952 = vmatprep.subr.mxu0 0.0
    %v953 = vand.u32 %v115, 4294901760
    %954 = vmatpush1.msra.mxu0 %v953
    %955 = vmatprep.subr.mxu0 0.0
    %v956 = vand.u32 %v116, 4294901760
    %957 = vmatpush1.msra.mxu0 %v956
    %958 = vmatprep.subr.mxu0 0.0
    %v959 = vand.u32 %v117, 4294901760
    %960 = vmatpush1.msra.mxu0 %v959
    %961 = vmatprep.subr.mxu0 0.0
    %v962 = vand.u32 %v118, 4294901760
    %963 = vmatpush1.msra.mxu0 %v962
    %964 = vmatprep.subr.mxu0 0.0
    %v965 = vand.u32 %v119, 4294901760
    %966 = vmatpush1.msra.mxu0 %v965
    %967 = vmatprep.subr.mxu0 0.0
    %v968 = vand.u32 %v120, 4294901760
    %969 = vmatpush1.msra.mxu0 %v968
    %970 = vmatprep.subr.mxu0 0.0
    %v971 = vand.u32 %v121, 4294901760
    %972 = vmatpush1.msra.mxu0 %v971
    %973 = vmatprep.subr.mxu0 0.0
    %v974 = vand.u32 %v122, 4294901760
    %975 = vmatpush1.msra.mxu0 %v974
    %976 = vmatprep.subr.mxu0 0.0
    %v977 = vand.u32 %v123, 4294901760
    %978 = vmatpush1.msra.mxu0 %v977
    %979 = vmatprep.subr.mxu0 0.0
    %v980 = vand.u32 %v124, 4294901760
    %981 = vmatpush1.msra.mxu0 %v980
    %982 = vmatprep.subr.mxu0 0.0
    %v983 = vand.u32 %v125, 4294901760
    %984 = vmatpush1.msra.mxu0 %v983
    %985 = vmatprep.subr.mxu0 0.0
    %v986 = vand.u32 %v126, 4294901760
    %987 = vmatpush1.msra.mxu0 %v986
    %988 = vmatprep.subr.mxu0 0.0
    %989 = vmatpush1.msra.mxu0 0.0
    %990 = vmatprep.subr.mxu0 0.0
    %991 = vmatpush1.msra.mxu0 0.0
    %992 = vmatprep.subr.mxu0 0.0
    %993 = vmatpush1.msra.mxu0 0.0
    %994 = vmatprep.subr.mxu0 0.0
    %995 = vmatpush1.msra.mxu0 0.0
    %996 = vmatprep.subr.mxu0 0.0
    %997 = vmatpush1.msra.mxu0 0.0
    %998 = vmatprep.subr.mxu0 0.0
    %999 = vmatpush1.msra.mxu0 0.0
    %1000 = vmatprep.subr.mxu0 0.0
    %1001 = vmatpush1.msra.mxu0 0.0
    %1002 = vmatprep.subr.mxu0 0.0
    %1003 = vmatpush1.msra.mxu0 0.0
    %1004 = vmatprep.subr.mxu0 0.0
    %1005 = vmatpush1.msra.mxu0 0.0
    %1006 = vmatprep.subr.mxu0 0.0
    %1007 = vmatpush1.msra.mxu0 0.0
    %1008 = vmatprep.subr.mxu0 0.0
    %1009 = vmatpush1.msra.mxu0 0.0
    %1010 = vmatprep.subr.mxu0 0.0
    %1011 = vmatpush1.msra.mxu0 0.0
    %1012 = vmatprep.subr.mxu0 0.0
    %1013 = vmatpush1.msra.mxu0 0.0
    %1014 = vmatprep.subr.mxu0 0.0
    %1015 = vmatpush1.msra.mxu0 0.0
    %1016 = vmatprep.subr.mxu0 0.0
    %1017 = vmatpush1.msra.mxu0 0.0
    %1018 = vmatprep.subr.mxu0 0.0
    %1019 = vmatpush1.msra.mxu0 0.0
    %1020 = vmatprep.mubr.f32.mxu0 0.0
    %v1021 = vand.u32 %v103, 4294901760
    %1022 = vmatmul.mubr.f32.gmra.mrb[0].mxu0 %v1021
    %v1023 = vpop.f32.mrb[0].mxu0
    %v1024 = vadd.f32 %v895, %v1023
    %v1025 = vpop.f32.mrb[0].mxu0
    %1026 = vmatprep.mubr.f32.mxu0 0.0
    %v1027 = vand.u32 %v104, 4294901760
    %1028 = vmatmul.mubr.f32.gmra.mrb[0].mxu0 %v1027
    %v1029 = vpop.f32.mrb[0].mxu0
    %v1030 = vadd.f32 %v901, %v1029
    %v1031 = vpop.f32.mrb[0].mxu0
    %1032 = vmatprep.mubr.f32.mxu0 0.0
    %v1033 = vand.u32 %v105, 4294901760
    %1034 = vmatmul.mubr.f32.gmra.mrb[0].mxu0 %v1033
    %v1035 = vpop.f32.mrb[0].mxu0
    %v1036 = vadd.f32 %v907, %v1035
    %v1037 = vpop.f32.mrb[0].mxu0
    %1038 = vmatprep.mubr.f32.mxu0 0.0
    %v1039 = vand.u32 %v106, 4294901760
    %1040 = vmatmul.mubr.f32.gmra.mrb[0].mxu0 %v1039
    %v1041 = vpop.f32.mrb[0].mxu0
    %v1042 = vadd.f32 %v913, %v1041
    %v1043 = vpop.f32.mrb[0].mxu0
    %1044 = vmatprep.mubr.f32.mxu0 0.0
    %v1045 = vand.u32 %v107, 4294901760
    %1046 = vmatmul.mubr.f32.gmra.mrb[0].mxu0 %v1045
    %v1047 = vpop.f32.mrb[0].mxu0
    %v1048 = vadd.f32 %v919, %v1047
    %v1049 = vpop.f32.mrb[0].mxu0
    %1050 = vmatprep.mubr.f32.mxu0 0.0
    %v1051 = vand.u32 %v108, 4294901760
    %1052 = vmatmul.mubr.f32.gmra.mrb[0].mxu0 %v1051
    %v1053 = vpop.f32.mrb[0].mxu0
    %v1054 = vadd.f32 %v925, %v1053
    %v1055 = vpop.f32.mrb[0].mxu0
    %1056 = vmatprep.mubr.f32.mxu0 0.0
    %v1057 = vand.u32 %v109, 4294901760
    %1058 = vmatmul.mubr.f32.gmra.mrb[0].mxu0 %v1057
    %v1059 = vpop.f32.mrb[0].mxu0
    %v1060 = vadd.f32 %v931, %v1059
    %v1061 = vpop.f32.mrb[0].mxu0
    %1062 = vmatprep.mubr.f32.mxu0 0.0
    %v1063 = vand.u32 %v110, 4294901760
    %1064 = vmatmul.mubr.f32.gmra.mrb[0].mxu0 %v1063
    %v1065 = vpop.f32.mrb[0].mxu0
    %v1066 = vadd.f32 %v937, %v1065
    %v1067 = vpop.f32.mrb[0].mxu0
    %1068 = vdwg.mxu0
    %v1069 = vld [vmem:[%s2] sm:$0xff]
    %v1070 = vadd.f32 %v1024, %v1069
    %v1071 = vadd.f32 %v1030, %v1069
    %v1072 = vadd.f32 %v1036, %v1069
    %v1073 = vadd.f32 %v1042, %v1069
    %v1074 = vadd.f32 %v1048, %v1069
    %v1075 = vadd.f32 %v1054, %v1069
    %v1076 = vadd.f32 %v1060, %v1069
    %v1077 = vadd.f32 %v1066, %v1069
    %vm1078 = vcmask 261120
    %v1079 = vsel %vm1078, %v1070, 0.0
    %1080 = vadd.xlane.f32.xlu0 %v1079
    %v1081 = vpop.xlane.xlu0 %1080
    %v1082 = vsel %vm1078, %v1071, 0.0
    %1083 = vadd.xlane.f32.xlu0 %v1082
    %v1084 = vpop.xlane.xlu0 %1083
    %v1085 = vsel %vm1078, %v1072, 0.0
    %1086 = vadd.xlane.f32.xlu0 %v1085
    %v1087 = vpop.xlane.xlu0 %1086
    %v1088 = vsel %vm1078, %v1073, 0.0
    %1089 = vadd.xlane.f32.xlu0 %v1088
    %v1090 = vpop.xlane.xlu0 %1089
    %v1091 = vsel %vm1078, %v1074, 0.0
    %1092 = vadd.xlane.f32.xlu0 %v1091
    %v1093 = vpop.xlane.xlu0 %1092
    %v1094 = vsel %vm1078, %v1075, 0.0
    %1095 = vadd.xlane.f32.xlu0 %v1094
    %v1096 = vpop.xlane.xlu0 %1095
    %v1097 = vsel %vm1078, %v1076, 0.0
    %1098 = vadd.xlane.f32.xlu0 %v1097
    %v1099 = vpop.xlane.xlu0 %1098
    %v1100 = vsel %vm1078, %v1077, 0.0
    %1101 = vadd.xlane.f32.xlu0 %v1100
    %v1102 = vpop.xlane.xlu0 %1101
    %v1103 = vrcp.pop 32.0
    %v1104 = vmul.f32 %v1081, %v1103
    %v1105 = vmul.f32 %v1084, %v1103
    %v1106 = vmul.f32 %v1087, %v1103
    %v1107 = vmul.f32 %v1090, %v1103
    %v1108 = vmul.f32 %v1093, %v1103
    %v1109 = vmul.f32 %v1096, %v1103
    %v1110 = vmul.f32 %v1099, %v1103
    %v1111 = vmul.f32 %v1102, %v1103
    %v1112 = vsub.f32 %v1070, %v1104
    %v1113 = vsub.f32 %v1071, %v1105
    %v1114 = vsub.f32 %v1072, %v1106
    %v1115 = vsub.f32 %v1073, %v1107
    %v1116 = vsub.f32 %v1074, %v1108
    %v1117 = vsub.f32 %v1075, %v1109
    %v1118 = vsub.f32 %v1076, %v1110
    %v1119 = vsub.f32 %v1077, %v1111
    %v1120 = vmul.f32 %v1112, %v1112
    %v1121 = vmul.f32 %v1113, %v1113
    %v1122 = vmul.f32 %v1114, %v1114
    %v1123 = vmul.f32 %v1115, %v1115
    %v1124 = vmul.f32 %v1116, %v1116
    %v1125 = vmul.f32 %v1117, %v1117
    %v1126 = vmul.f32 %v1118, %v1118
    %v1127 = vmul.f32 %v1119, %v1119
    %v1128 = vsel %vm1078, %v1120, 0.0
    %1129 = vadd.xlane.f32.xlu0 %v1128
    %v1130 = vpop.xlane.xlu0 %1129
    %v1131 = vsel %vm1078, %v1121, 0.0
    %1132 = vadd.xlane.f32.xlu0 %v1131
    %v1133 = vpop.xlane.xlu0 %1132
    %v1134 = vsel %vm1078, %v1122, 0.0
    %1135 = vadd.xlane.f32.xlu0 %v1134
    %v1136 = vpop.xlane.xlu0 %1135
    %v1137 = vsel %vm1078, %v1123, 0.0
    %1138 = vadd.xlane.f32.xlu0 %v1137
    %v1139 = vpop.xlane.xlu0 %1138
    %v1140 = vsel %vm1078, %v1124, 0.0
    %1141 = vadd.xlane.f32.xlu0 %v1140
    %v1142 = vpop.xlane.xlu0 %1141
    %v1143 = vsel %vm1078, %v1125, 0.0
    %1144 = vadd.xlane.f32.xlu0 %v1143
    %v1145 = vpop.xlane.xlu0 %1144
    %v1146 = vsel %vm1078, %v1126, 0.0
    %1147 = vadd.xlane.f32.xlu0 %v1146
    %v1148 = vpop.xlane.xlu0 %1147
    %v1149 = vsel %vm1078, %v1127, 0.0
    %1150 = vadd.xlane.f32.xlu0 %v1149
    %v1151 = vpop.xlane.xlu0 %1150
    %v1152 = vmul.f32 %v1130, %v1103
    %v1153 = vmul.f32 %v1133, %v1103
    %v1154 = vmul.f32 %v1136, %v1103
    %v1155 = vmul.f32 %v1139, %v1103
    %v1156 = vmul.f32 %v1142, %v1103
    %v1157 = vmul.f32 %v1145, %v1103
    %v1158 = vmul.f32 %v1148, %v1103
    %v1159 = vmul.f32 %v1151, %v1103
    %v1160 = vld [vmem:[%s3] sm:$0x1]
    %v1161 = vadd.f32 %v1152, 1e-12
    %v1162 = vadd.f32 %v1153, 1e-12
    %v1163 = vadd.f32 %v1154, 1e-12
    %v1164 = vadd.f32 %v1155, 1e-12
    %v1165 = vadd.f32 %v1156, 1e-12
    %v1166 = vadd.f32 %v1157, 1e-12
    %v1167 = vadd.f32 %v1158, 1e-12
    %v1168 = vadd.f32 %v1159, 1e-12
    %v1169 = vrsqrt.pop %v1161
    %v1170 = vrsqrt.pop %v1162
    %v1171 = vrsqrt.pop %v1163
    %v1172 = vrsqrt.pop %v1164
    %v1173 = vrsqrt.pop %v1165
    %v1174 = vrsqrt.pop %v1166
    %v1175 = vrsqrt.pop %v1167
    %v1176 = vrsqrt.pop %v1168
    %v1177 = vmul.f32 %v1112, %v1169
    %v1178 = vmul.f32 %v1113, %v1170
    %v1179 = vmul.f32 %v1114, %v1171
    %v1180 = vmul.f32 %v1115, %v1172
    %v1181 = vmul.f32 %v1116, %v1173
    %v1182 = vmul.f32 %v1117, %v1174
    %v1183 = vmul.f32 %v1118, %v1175
    %v1184 = vmul.f32 %v1119, %v1176
    %v1186 = vlaneseq
    %v1187 = vshrl.u32 %v1186, 7
    %v1188 = vsub.s32 0, %v1187
    %v1189 = vrot.slane %v1160, %v1188
    %v1191 = vmul.f32 %v1189, %v1177
    %v1192 = vmul.f32 %v1189, %v1178
    %v1193 = vmul.f32 %v1189, %v1179
    %v1194 = vmul.f32 %v1189, %v1180
    %v1195 = vmul.f32 %v1189, %v1181
    %v1196 = vmul.f32 %v1189, %v1182
    %v1197 = vmul.f32 %v1189, %v1183
    %v1198 = vmul.f32 %v1189, %v1184
    %v1199 = vld [vmem:[%s4] sm:$0x1]
    %v1201 = vlaneseq
    %v1202 = vshrl.u32 %v1201, 7
    %v1203 = vsub.s32 0, %v1202
    %v1204 = vrot.slane %v1199, %v1203
    %v1206 = vadd.f32 %v1191, %v1204
    %v1207 = vadd.f32 %v1192, %v1204
    %v1208 = vadd.f32 %v1193, %v1204
    %v1209 = vadd.f32 %v1194, %v1204
    %v1210 = vadd.f32 %v1195, %v1204
    %v1211 = vadd.f32 %v1196, %v1204
    %v1212 = vadd.f32 %v1197, %v1204
    %v1213 = vadd.f32 %v1198, %v1204
    %1214 = vst.msk [vmem:[#allocation2] sm:$0xff] %vm1078, %v1206
    %1215 = vst.msk [vmem:[#allocation2 + $0x8] sm:$0xff] %vm1078, %v1207
    %1216 = vst.msk [vmem:[#allocation2 + $0x10] sm:$0xff] %vm1078, %v1208
    %1217 = vst.msk [vmem:[#allocation2 + $0x18] sm:$0xff] %vm1078, %v1209
    %1218 = vst.msk [vmem:[#allocation2 + $0x20] sm:$0xff] %vm1078, %v1210
    %1219 = vst.msk [vmem:[#allocation2 + $0x28] sm:$0xff] %vm1078, %v1211
    %1220 = vst.msk [vmem:[#allocation2 + $0x30] sm:$0xff] %vm1078, %v1212
    %1221 = vst.msk [vmem:[#allocation2 + $0x38] sm:$0xff] %vm1078, %v1213
    %v1222 = vld [vmem:[#allocation2] sm:$0x1]
    %v1223 = vld [vmem:[#allocation2 + $0x8] sm:$0x1]
    %v1224 = vld [vmem:[#allocation2 + $0x10] sm:$0x1]
    %v1225 = vld [vmem:[#allocation2 + $0x18] sm:$0x1]
    %v1226 = vld [vmem:[#allocation2 + $0x20] sm:$0x1]
    %v1227 = vld [vmem:[#allocation2 + $0x28] sm:$0x1]
    %v1228 = vld [vmem:[#allocation2 + $0x30] sm:$0x1]
    %v1229 = vld [vmem:[#allocation2 + $0x38] sm:$0x1]
    %v1238 = vrot.slane %v1223, 7
    %vm1239 = vcmask 1041409
    %v1240 = vsel %vm1239, %v1238, %v1222
    %v1241 = vrot.slane %v1224, 6
    %vm1242 = vcmask 1042434
    %v1243 = vsel %vm1242, %v1241, %v1240
    %v1244 = vrot.slane %v1225, 5
    %vm1245 = vcmask 1043459
    %v1246 = vsel %vm1245, %v1244, %v1243
    %v1247 = vrot.slane %v1226, 4
    %vm1248 = vcmask 1044484
    %v1249 = vsel %vm1248, %v1247, %v1246
    %v1250 = vrot.slane %v1227, 3
    %vm1251 = vcmask 1045509
    %v1252 = vsel %vm1251, %v1250, %v1249
    %v1253 = vrot.slane %v1228, 2
    %vm1254 = vcmask 1046534
    %v1255 = vsel %vm1254, %v1253, %v1252
    %v1256 = vrot.slane %v1229, 1
    %vm1257 = vcmask 1047559
    %v1258 = vsel %vm1257, %v1256, %v1255
    %1260 = vst.msk [vmem:[#allocation3] sm:$0xff] %vm1078, %v1258
    %v1261 = vld [vmem:[#allocation2 + $0x1] sm:$0x1]
    %v1262 = vld [vmem:[#allocation2 + $0x9] sm:$0x1]
    %v1263 = vld [vmem:[#allocation2 + $0x11] sm:$0x1]
    %v1264 = vld [vmem:[#allocation2 + $0x19] sm:$0x1]
    %v1265 = vld [vmem:[#allocation2 + $0x21] sm:$0x1]
    %v1266 = vld [vmem:[#allocation2 + $0x29] sm:$0x1]
    %v1267 = vld [vmem:[#allocation2 + $0x31] sm:$0x1]
    %v1268 = vld [vmem:[#allocation2 + $0x39] sm:$0x1]
    %v1277 = vrot.slane %v1262, 7
    %v1278 = vsel %vm1239, %v1277, %v1261
    %v1279 = vrot.slane %v1263, 6
    %v1280 = vsel %vm1242, %v1279, %v1278
    %v1281 = vrot.slane %v1264, 5
    %v1282 = vsel %vm1245, %v1281, %v1280
    %v1283 = vrot.slane %v1265, 4
    %v1284 = vsel %vm1248, %v1283, %v1282
    %v1285 = vrot.slane %v1266, 3
    %v1286 = vsel %vm1251, %v1285, %v1284
    %v1287 = vrot.slane %v1267, 2
    %v1288 = vsel %vm1254, %v1287, %v1286
    %v1289 = vrot.slane %v1268, 1
    %v1290 = vsel %vm1257, %v1289, %v1288
    %1291 = vrot.lane.b32.xlu0 %v1290, 32
    %v1292 = vpop.permute.xlu0 %1291
    %vm1294 = vcmask 523520
    %1295 = vst.msk [vmem:[#allocation3] sm:$0xff] %vm1294, %v1292
    %v1296 = vld [vmem:[#allocation2 + $0x2] sm:$0x1]
    %v1297 = vld [vmem:[#allocation2 + $0xa] sm:$0x1]
    %v1298 = vld [vmem:[#allocation2 + $0x12] sm:$0x1]
    %v1299 = vld [vmem:[#allocation2 + $0x1a] sm:$0x1]
    %v1300 = vld [vmem:[#allocation2 + $0x22] sm:$0x1]
    %v1301 = vld [vmem:[#allocation2 + $0x2a] sm:$0x1]
    %v1302 = vld [vmem:[#allocation2 + $0x32] sm:$0x1]
    %v1303 = vld [vmem:[#allocation2 + $0x3a] sm:$0x1]
    %v1312 = vrot.slane %v1297, 7
    %v1313 = vsel %vm1239, %v1312, %v1296
    %v1314 = vrot.slane %v1298, 6
    %v1315 = vsel %vm1242, %v1314, %v1313
    %v1316 = vrot.slane %v1299, 5
    %v1317 = vsel %vm1245, %v1316, %v1315
    %v1318 = vrot.slane %v1300, 4
    %v1319 = vsel %vm1248, %v1318, %v1317
    %v1320 = vrot.slane %v1301, 3
    %v1321 = vsel %vm1251, %v1320, %v1319
    %v1322 = vrot.slane %v1302, 2
    %v1323 = vsel %vm1254, %v1322, %v1321
    %v1324 = vrot.slane %v1303, 1
    %v1325 = vsel %vm1257, %v1324, %v1323
    %1326 = vrot.lane.b32.xlu0 %v1325, 64
    %v1327 = vpop.permute.xlu0 %1326
    %vm1329 = vcmask 785920
    %1330 = vst.msk [vmem:[#allocation3] sm:$0xff] %vm1329, %v1327
    %v1331 = vld [vmem:[#allocation2 + $0x3] sm:$0x1]
    %v1332 = vld [vmem:[#allocation2 + $0xb] sm:$0x1]
    %v1333 = vld [vmem:[#allocation2 + $0x13] sm:$0x1]
    %v1334 = vld [vmem:[#allocation2 + $0x1b] sm:$0x1]
    %v1335 = vld [vmem:[#allocation2 + $0x23] sm:$0x1]
    %v1336 = vld [vmem:[#allocation2 + $0x2b] sm:$0x1]
    %v1337 = vld [vmem:[#allocation2 + $0x33] sm:$0x1]
    %v1338 = vld [vmem:[#allocation2 + $0x3b] sm:$0x1]
    %v1347 = vrot.slane %v1332, 7
    %v1348 = vsel %vm1239, %v1347, %v1331
    %v1349 = vrot.slane %v1333, 6
    %v1350 = vsel %vm1242, %v1349, %v1348
    %v1351 = vrot.slane %v1334, 5
    %v1352 = vsel %vm1245, %v1351, %v1350
    %v1353 = vrot.slane %v1335, 4
    %v1354 = vsel %vm1248, %v1353, %v1352
    %v1355 = vrot.slane %v1336, 3
    %v1356 = vsel %vm1251, %v1355, %v1354
    %v1357 = vrot.slane %v1337, 2
    %v1358 = vsel %vm1254, %v1357, %v1356
    %v1359 = vrot.slane %v1338, 1
    %v1360 = vsel %vm1257, %v1359, %v1358
    %1361 = vrot.lane.b32.xlu0 %v1360, 96
    %v1362 = vpop.permute.xlu0 %1361
    %vm1364 = vcmask 1048320
    %1365 = vst.msk [vmem:[#allocation3] sm:$0xff] %vm1364, %v1362
    %v1366 = vld [vmem:[#allocation2 + $0x4] sm:$0x1]
    %v1367 = vld [vmem:[#allocation2 + $0xc] sm:$0x1]
    %v1368 = vld [vmem:[#allocation2 + $0x14] sm:$0x1]
    %v1369 = vld [vmem:[#allocation2 + $0x1c] sm:$0x1]
    %v1370 = vld [vmem:[#allocation2 + $0x24] sm:$0x1]
    %v1371 = vld [vmem:[#allocation2 + $0x2c] sm:$0x1]
    %v1372 = vld [vmem:[#allocation2 + $0x34] sm:$0x1]
    %v1373 = vld [vmem:[#allocation2 + $0x3c] sm:$0x1]
    %v1382 = vrot.slane %v1367, 7
    %v1383 = vsel %vm1239, %v1382, %v1366
    %v1384 = vrot.slane %v1368, 6
    %v1385 = vsel %vm1242, %v1384, %v1383
    %v1386 = vrot.slane %v1369, 5
    %v1387 = vsel %vm1245, %v1386, %v1385
    %v1388 = vrot.slane %v1370, 4
    %v1389 = vsel %vm1248, %v1388, %v1387
    %v1390 = vrot.slane %v1371, 3
    %v1391 = vsel %vm1251, %v1390, %v1389
    %v1392 = vrot.slane %v1372, 2
    %v1393 = vsel %vm1254, %v1392, %v1391
    %v1394 = vrot.slane %v1373, 1
    %v1395 = vsel %vm1257, %v1394, %v1393
    %1397 = vst.msk [vmem:[#allocation3 + $0x8] sm:$0xff] %vm1078, %v1395
    %v1398 = vld [vmem:[#allocation2 + $0x5] sm:$0x1]
    %v1399 = vld [vmem:[#allocation2 + $0xd] sm:$0x1]
    %v1400 = vld [vmem:[#allocation2 + $0x15] sm:$0x1]
    %v1401 = vld [vmem:[#allocation2 + $0x1d] sm:$0x1]
    %v1402 = vld [vmem:[#allocation2 + $0x25] sm:$0x1]
    %v1403 = vld [vmem:[#allocation2 + $0x2d] sm:$0x1]
    %v1404 = vld [vmem:[#allocation2 + $0x35] sm:$0x1]
    %v1405 = vld [vmem:[#allocation2 + $0x3d] sm:$0x1]
    %v1414 = vrot.slane %v1399, 7
    %v1415 = vsel %vm1239, %v1414, %v1398
    %v1416 = vrot.slane %v1400, 6
    %v1417 = vsel %vm1242, %v1416, %v1415
    %v1418 = vrot.slane %v1401, 5
    %v1419 = vsel %vm1245, %v1418, %v1417
    %v1420 = vrot.slane %v1402, 4
    %v1421 = vsel %vm1248, %v1420, %v1419
    %v1422 = vrot.slane %v1403, 3
    %v1423 = vsel %vm1251, %v1422, %v1421
    %v1424 = vrot.slane %v1404, 2
    %v1425 = vsel %vm1254, %v1424, %v1423
    %v1426 = vrot.slane %v1405, 1
    %v1427 = vsel %vm1257, %v1426, %v1425
    %1428 = vrot.lane.b32.xlu0 %v1427, 32
    %v1429 = vpop.permute.xlu0 %1428
    %1431 = vst.msk [vmem:[#allocation3 + $0x8] sm:$0xff] %vm1294, %v1429
    %v1432 = vld [vmem:[#allocation2 + $0x6] sm:$0x1]
    %v1433 = vld [vmem:[#allocation2 + $0xe] sm:$0x1]
    %v1434 = vld [vmem:[#allocation2 + $0x16] sm:$0x1]
    %v1435 = vld [vmem:[#allocation2 + $0x1e] sm:$0x1]
    %v1436 = vld [vmem:[#allocation2 + $0x26] sm:$0x1]
    %v1437 = vld [vmem:[#allocation2 + $0x2e] sm:$0x1]
    %v1438 = vld [vmem:[#allocation2 + $0x36] sm:$0x1]
    %v1439 = vld [vmem:[#allocation2 + $0x3e] sm:$0x1]
    %v1448 = vrot.slane %v1433, 7
    %v1449 = vsel %vm1239, %v1448, %v1432
    %v1450 = vrot.slane %v1434, 6
    %v1451 = vsel %vm1242, %v1450, %v1449
    %v1452 = vrot.slane %v1435, 5
    %v1453 = vsel %vm1245, %v1452, %v1451
    %v1454 = vrot.slane %v1436, 4
    %v1455 = vsel %vm1248, %v1454, %v1453
    %v1456 = vrot.slane %v1437, 3
    %v1457 = vsel %vm1251, %v1456, %v1455
    %v1458 = vrot.slane %v1438, 2
    %v1459 = vsel %vm1254, %v1458, %v1457
    %v1460 = vrot.slane %v1439, 1
    %v1461 = vsel %vm1257, %v1460, %v1459
    %1462 = vrot.lane.b32.xlu0 %v1461, 64
    %v1463 = vpop.permute.xlu0 %1462
    %1465 = vst.msk [vmem:[#allocation3 + $0x8] sm:$0xff] %vm1329, %v1463
    %v1466 = vld [vmem:[#allocation2 + $0x7] sm:$0x1]
    %v1467 = vld [vmem:[#allocation2 + $0xf] sm:$0x1]
    %v1468 = vld [vmem:[#allocation2 + $0x17] sm:$0x1]
    %v1469 = vld [vmem:[#allocation2 + $0x1f] sm:$0x1]
    %v1470 = vld [vmem:[#allocation2 + $0x27] sm:$0x1]
    %v1471 = vld [vmem:[#allocation2 + $0x2f] sm:$0x1]
    %v1472 = vld [vmem:[#allocation2 + $0x37] sm:$0x1]
    %v1473 = vld [vmem:[#allocation2 + $0x3f] sm:$0x1]
    %v1482 = vrot.slane %v1467, 7
    %v1483 = vsel %vm1239, %v1482, %v1466
    %v1484 = vrot.slane %v1468, 6
    %v1485 = vsel %vm1242, %v1484, %v1483
    %v1486 = vrot.slane %v1469, 5
    %v1487 = vsel %vm1245, %v1486, %v1485
    %v1488 = vrot.slane %v1470, 4
    %v1489 = vsel %vm1248, %v1488, %v1487
    %v1490 = vrot.slane %v1471, 3
    %v1491 = vsel %vm1251, %v1490, %v1489
    %v1492 = vrot.slane %v1472, 2
    %v1493 = vsel %vm1254, %v1492, %v1491
    %v1494 = vrot.slane %v1473, 1
    %v1495 = vsel %vm1257, %v1494, %v1493
    %1496 = vrot.lane.b32.xlu0 %v1495, 96
    %v1497 = vpop.permute.xlu0 %1496
    %1499 = vst.msk [vmem:[#allocation3 + $0x8] sm:$0xff] %vm1364, %v1497
    // Predicated region
    $region22: #{tpu_custom_call.1} parent=1 // pred_check
      _
    $region23: #{tpu_custom_call.1} parent=1 // pred_check_branch
      %1501 = sbr.rel (0) target = $region25
    $region24: #{tpu_custom_call.1} parent=1 // pred_region
      %s1503 = ssub.s32 256, 256
      %1504 = vsyncadd [#allocation4], %s1503
      %s1506 = sshll.u32 [#allocation3], 4
      %s1507 = int_to_ptr.vmem [resolvable:$true] %s1506
      %1509 = dma.vmem_to_hbm [thread:$0]  %s1507, 256, %s5, [#allocation4]
    $region25: #{tpu_custom_call.1} parent=1 // pred_fallthru
      _
    // Predicated region
    $region26: #{tpu_custom_call.1} parent=1 // pred_check
      _
    $region27: #{tpu_custom_call.1} parent=1 // pred_check_branch
      %1511 = sbr.rel (0) target = $region29
    $region28: #{tpu_custom_call.1} parent=1 // pred_region
      %1512 = dma.done [#allocation4], 256
    $region29: #{tpu_custom_call.1} parent=1 // pred_fallthru
      _
    %1513 = vsyncpa [#allocation4], 1

</llo_original>
